<compile_context>
chip_gen: v7x
topology: tpu7x:2x2x1
jax: 0.10.0
libtpu: 0.0.40
codegen_flags: <defaults>
</compile_context>

<pallas_src>
import functools

import jax
import jax.numpy as jnp
from jax import lax
from jax.experimental import pallas as pl
from jax.experimental.pallas import tpu as pltpu


def _layernorm_f32(x, gamma, beta, eps=1e-5):
    """LayerNorm in float32 with single-pass statistics (E[x], E[x^2])."""
    xf = x.astype(jnp.float32)
    mu = jnp.mean(xf, axis=-1, keepdims=True)
    ms = jnp.mean(xf * xf, axis=-1, keepdims=True)
    var = jnp.maximum(ms - mu * mu, 0.0)
    return (xf - mu) * lax.rsqrt(var + eps) * gamma + beta


def _residual_attention_block_kernel(
    x_ref,
    ln1_g_ref, ln1_b_ref,
    wqkv_ref, bqkv_ref,
    wo_ref, bo_ref,
    ln2_g_ref, ln2_b_ref,
    wfc_ref, bfc_ref,
    wproj_ref, bproj_ref,
    o_ref,
    *, n_head: int,
):
    x = x_ref[...]                                  # [Nb, L, D]
    Nb, L, D = x.shape
    hd = D // n_head
    M = Nb * L

    xf = x.reshape(M, D).astype(jnp.float32)

    # ---------------- attention(ln_1(x)) ----------------
    # attn_mask is None for this instantiation (no additive mask applied).
    xn = _layernorm_f32(xf, ln1_g_ref[...], ln1_b_ref[...]).astype(jnp.bfloat16)

    # fused QKV projection; 1/sqrt(hd) was pre-folded into the Q columns.
    qkv = (jnp.dot(xn, wqkv_ref[...], preferred_element_type=jnp.float32)
           + bqkv_ref[...]).astype(jnp.bfloat16)    # [M, 3D] bf16
    q = qkv[:, 0:D].reshape(Nb, L, D)
    k = qkv[:, D:2 * D].reshape(Nb, L, D)
    v = qkv[:, 2 * D:3 * D].reshape(Nb, L, D)

    # Per-head scores/context via 3-D einsums with a single batch dim
    # (known-good Mosaic dot_general lowering).  The output projection is
    # done ONCE with K=D on the re-assembled context.
    # TODO(synk): fold the head loop into one batched-head einsum once Mosaic
    #             dot_general supports multiple batch dimensions.
    ctx_parts = []
    for h in range(n_head):
        lo = h * hd
        qh = q[:, :, lo:lo + hd]                    # [Nb, L, hd] bf16
        kh = k[:, :, lo:lo + hd]
        vh = v[:, :, lo:lo + hd]
        s = jnp.einsum("bqd,bkd->bqk", qh, kh,
                       preferred_element_type=jnp.float32)        # [Nb, L, L]
        s = s - jnp.max(s, axis=-1, keepdims=True)
        p = jnp.exp(s)
        p = p * pl.reciprocal(jnp.sum(p, axis=-1, keepdims=True), approx=True)
        ctx_parts.append(
            jnp.einsum("bqk,bkd->bqd", p.astype(jnp.bfloat16), vh,
                       preferred_element_type=jnp.float32))       # [Nb, L, hd]

    ctx = jnp.concatenate(ctx_parts, axis=-1).reshape(M, D).astype(jnp.bfloat16)
    attn = jnp.dot(ctx, wo_ref[...],
                   preferred_element_type=jnp.float32) + bo_ref[...]
    xf = xf + attn                                   # residual (f32)

    # ---------------- mlp(ln_2(x)), tiled over rows ----------------
    # One chunk per batch element of the block: the 4D-wide hidden only ever
    # exists as [L, 4D]; each chunk writes straight to o_ref.
    for b in range(Nb):
        rows = xf[b * L:(b + 1) * L, :]              # [L, D] f32 (static slice)
        xn2 = _layernorm_f32(rows, ln2_g_ref[...],
                             ln2_b_ref[...]).astype(jnp.bfloat16)
        hmid = (jnp.dot(xn2, wfc_ref[...], preferred_element_type=jnp.float32)
                + bfc_ref[...])
        hmid = hmid * jax.nn.sigmoid(1.702 * hmid)   # QuickGELU in f32
        y = (jnp.dot(hmid.astype(jnp.bfloat16), wproj_ref[...],
                     preferred_element_type=jnp.float32) + bproj_ref[...])
        o_ref[b, :, :] = (rows + y).astype(o_ref.dtype)


# ------------------------- parameters -------------------------
def init_params(key, d_model: int):
    """Deterministic synthetic parameters with PyTorch module shapes (f32)."""
    ks = jax.random.split(key, 8)
    s = 0.02
    return {
        "ln1_g": jnp.ones((d_model,), jnp.float32),
        "ln1_b": jnp.zeros((d_model,), jnp.float32),
        # nn.MultiheadAttention: in_proj_weight [3E, E], in_proj_bias [3E]
        "in_proj_w": jax.random.normal(ks[0], (3 * d_model, d_model), jnp.float32) * s,
        "in_proj_b": jax.random.normal(ks[1], (3 * d_model,), jnp.float32) * s,
        "out_proj_w": jax.random.normal(ks[2], (d_model, d_model), jnp.float32) * s,
        "out_proj_b": jax.random.normal(ks[3], (d_model,), jnp.float32) * s,
        "ln2_g": jnp.ones((d_model,), jnp.float32),
        "ln2_b": jnp.zeros((d_model,), jnp.float32),
        # mlp.c_fc: Linear(E, 4E), mlp.c_proj: Linear(4E, E)   (weights [out, in])
        "c_fc_w": jax.random.normal(ks[4], (4 * d_model, d_model), jnp.float32) * s,
        "c_fc_b": jax.random.normal(ks[5], (4 * d_model,), jnp.float32) * s,
        "c_proj_w": jax.random.normal(ks[6], (d_model, 4 * d_model), jnp.float32) * s,
        "c_proj_b": jax.random.normal(ks[7], (d_model,), jnp.float32) * s,
    }


def prepare_params(params, n_head: int):
    """One-time weight prep: transpose to [in, out], fuse QKV, fold 1/sqrt(hd)
    into the Q columns, cast matmul weights to bf16.  Biases / LN affine stay
    f32 (exact adds, f32 elementwise)."""
    D = params["ln1_g"].shape[0]
    hd = D // n_head
    scale = 1.0 / jnp.sqrt(jnp.float32(hd))
    wdt = jnp.bfloat16

    w_in = params["in_proj_w"]                       # [3D, D]
    b_in = params["in_proj_b"]                       # [3D]
    w_in_scaled = jnp.concatenate([w_in[:D] * scale, w_in[D:]], axis=0)
    b_in_scaled = jnp.concatenate([b_in[:D] * scale, b_in[D:]], axis=0)

    return {
        "ln1_g": params["ln1_g"].reshape(1, D).astype(jnp.float32),
        "ln1_b": params["ln1_b"].reshape(1, D).astype(jnp.float32),
        "w_qkv": w_in_scaled.T.astype(wdt),                        # [D, 3D]
        "b_qkv": b_in_scaled.reshape(1, 3 * D).astype(jnp.float32),
        "w_out": params["out_proj_w"].T.astype(wdt),               # [D, D]
        "b_out": params["out_proj_b"].reshape(1, D).astype(jnp.float32),
        "ln2_g": params["ln2_g"].reshape(1, D).astype(jnp.float32),
        "ln2_b": params["ln2_b"].reshape(1, D).astype(jnp.float32),
        "w_fc": params["c_fc_w"].T.astype(wdt),                    # [D, 4D]
        "b_fc": params["c_fc_b"].reshape(1, 4 * D).astype(jnp.float32),
        "w_proj": params["c_proj_w"].T.astype(wdt),                # [4D, D]
        "b_proj": params["c_proj_b"].reshape(1, D).astype(jnp.float32),
    }


# ------------------------- VMEM / tiling heuristics -------------------------
def _vmem_capacity_bytes():
    """Per-core VMEM capacity; conservative 64 MiB (v7x) fallback."""
    try:
        info = pltpu.get_tpu_info()
        for attr in ("vmem_capacity_bytes", "vmem_size_bytes", "vmem_bytes"):
            v = getattr(info, attr, None)
            if v:
                return int(v)
    except Exception:
        pass
    try:
        kind = jax.devices()[0].device_kind.lower()
        if any(t in kind for t in ("v5 lite", "v5e", "v5litepod", "v6", "trillium")):
            return 128 * 1024 * 1024
    except Exception:
        pass
    return 64 * 1024 * 1024


def _vmem_needed_bytes(nb, L, D, x_itemsize):
    M = nb * L
    weights = 12 * D * D * 2                 # bf16 resident weights (single-buffered)
    biases = 16 * D * 4                      # f32 biases + LN affine
    io = 2 * 2 * M * D * x_itemsize          # double-buffered x in/out blocks
    acts = M * D * (4 + 6 + 4 + 4)           # xf f32, qkv bf16, ctx f32, attn f32
    scores = 2 * nb * L * L * 4              # s / p (f32) in flight per head
    mlp = 2 * L * 4 * D * 4                  # per-chunk [L, 4D] hidden (f32)
    return weights + biases + io + acts + scores + mlp


def _pick_nb(N, L, D, x_itemsize, vmem_limit, max_nb=8):
    """Largest batch block that fits the VMEM budget, preferring >=2 grid
    steps so both v7x TensorCores get work."""
    budget = int(vmem_limit * 0.7)
    best = 1
    for nb in range(min(max_nb, N), 0, -1):
        if N % nb:
            continue
        if _vmem_needed_bytes(nb, L, D, x_itemsize) > budget:
            continue
        if N // nb >= 2:
            return nb
        best = max(best, nb)
    return best


def _weight_spec(a):
    """Full-array resident block; request single-buffering (never changes)."""
    ndim = a.ndim
    idx = lambda *_, n=ndim: (0,) * n
    try:
        return pl.BlockSpec(a.shape, idx, pipeline_mode=pl.Buffered(1))
    except Exception:
        return pl.BlockSpec(a.shape, idx)


# ------------------------- wrappers -------------------------
def residual_attention_block(x_lnd, prep, n_head: int, max_batch_block: int = 8):
    """x_lnd: [L, N, D] (PyTorch MHA layout). Returns [L, N, D]."""
    L, N, D = x_lnd.shape
    assert D % n_head == 0
    x = jnp.transpose(x_lnd, (1, 0, 2))              # kernel layout [N, L, D]

    vmem_cap = _vmem_capacity_bytes()
    vmem_limit = int(vmem_cap * 13 // 16)            # ~52 MiB v7x / ~104 MiB v5e,v6e
    nb = _pick_nb(N, L, D, x.dtype.itemsize, vmem_limit, max_batch_block)

    ins = [prep[k] for k in ("ln1_g", "ln1_b", "w_qkv", "b_qkv", "w_out", "b_out",
                             "ln2_g", "ln2_b", "w_fc", "b_fc", "w_proj", "b_proj")]

    M = N * L
    flops = (2 * M * D * 3 * D                 # qkv projection
             + 4 * N * L * L * D               # scores + PV (all heads)
             + 2 * M * D * D                   # output projection
             + 2 * M * D * 4 * D * 2)          # mlp c_fc + c_proj
    transcendentals = N * n_head * L * L + M * 4 * D
    bytes_accessed = 2 * M * D * x.dtype.itemsize + 12 * D * D * 2

    out = pl.pallas_call(
        functools.partial(_residual_attention_block_kernel, n_head=n_head),
        out_shape=jax.ShapeDtypeStruct((N, L, D), x.dtype),
        grid_spec=pltpu.PrefetchScalarGridSpec(
            num_scalar_prefetch=0,
            grid=(N // nb,),
            in_specs=[pl.BlockSpec((nb, L, D), lambda b: (b, 0, 0))]
                     + [_weight_spec(a) for a in ins],
            out_specs=pl.BlockSpec((nb, L, D), lambda b: (b, 0, 0)),
        ),
        compiler_params=pltpu.CompilerParams(
            dimension_semantics=("parallel",),
            vmem_limit_bytes=vmem_limit,
        ),
        cost_estimate=pl.CostEstimate(
            flops=int(flops),
            transcendentals=int(transcendentals),
            bytes_accessed=int(bytes_accessed)),
    )(x, *ins)

    return jnp.transpose(out, (1, 0, 2))             # back to [L, N, D]


def residual_attention_block_forward(inputs, prep, n_head: int):
    """Mirrors ResidualAttentionBlock.forward for (x, text) inputs.

    - text is not None: x is a single [L, N, D] tensor.
    - text is None:     x is a tuple of 5 [L, N, D] tensors; with
                        l_adapter=None / if_fusion=None each stream gets the
                        same block, so all 5 are fused into ONE pallas_call
                        along the batch axis.
    """
    x, text = inputs
    if text is not None:
        return residual_attention_block(x, prep, n_head), text
    # TODO(synk): VAdapter / visual_fusion_mlp / l_adapter fusion paths are
    # untranslatable (classes undefined in the source file).
    # TODO(synk): for a full multi-layer model, keep the 5 streams fused across
    # consecutive blocks to avoid the per-layer concat/slice HBM round trips.
    n_streams = len(x)
    N = x[0].shape[1]
    xs = jnp.concatenate(list(x), axis=1)            # [L, n_streams*N, D]
    out = residual_attention_block(xs, prep, n_head)
    outs = [out[:, i * N:(i + 1) * N, :] for i in range(n_streams)]
    return outs, text


# ---------------- pure-JAX reference (for correctness check) ----------------
def _reference(x_lnd, params, n_head):
    L, N, D = x_lnd.shape
    hd = D // n_head

    def ln(x, g, b):
        xf = x.astype(jnp.float32)
        mu = xf.mean(-1, keepdims=True)
        var = ((xf - mu) ** 2).mean(-1, keepdims=True)
        return ((xf - mu) / jnp.sqrt(var + 1e-5)) * g + b

    def mha(x):  # x: [L, N, D]
        qkv = jnp.einsum("lnd,ed->lne", x, params["in_proj_w"]) + params["in_proj_b"]
        q, k, v = qkv[..., :D], qkv[..., D:2 * D], qkv[..., 2 * D:]
        q = q.reshape(L, N, n_head, hd) / jnp.sqrt(jnp.float32(hd))
        k = k.reshape(L, N, n_head, hd)
        v = v.reshape(L, N, n_head, hd)
        s = jnp.einsum("qnhd,knhd->nhqk", q, k)
        p = jax.nn.softmax(s, axis=-1)
        c = jnp.einsum("nhqk,knhd->qnhd", p, v).reshape(L, N, D)
        return jnp.einsum("lnd,ed->lne", c, params["out_proj_w"]) + params["out_proj_b"]

    x = x_lnd + mha(ln(x_lnd, params["ln1_g"], params["ln1_b"]))
    h = jnp.einsum("lnd,ed->lne", ln(x, params["ln2_g"], params["ln2_b"]),
                   params["c_fc_w"]) + params["c_fc_b"]
    h = h * jax.nn.sigmoid(1.702 * h)
    y = jnp.einsum("lnd,ed->lne", h, params["c_proj_w"]) + params["c_proj_b"]
    return x + y


if __name__ == "__main__":
    d_model, n_head = 64, 4
    seq_len, batch = 8, 2

    key = jax.random.PRNGKey(0)
    kx, kp, kv = jax.random.split(key, 3)
    x = jax.random.normal(kx, (seq_len, batch, d_model), jnp.float32)
    params = init_params(kp, d_model)
    prep = prepare_params(params, n_head)
    text = jnp.zeros((1,), jnp.float32)              # placeholder "text" branch

    # ---- text branch ----
    out, _ = residual_attention_block_forward((x, text), prep, n_head)
    out = jax.block_until_ready(out)
    ref = _reference(x, params, n_head)
    assert out.shape == (seq_len, batch, d_model)
    # bf16 MXU operands (f32 accumulation) + approx softmax reciprocal =>
    # looser tolerance than pure-f32 (intentional precision tradeoff).
    assert jnp.allclose(out, ref, atol=2e-2, rtol=2e-2), (
        float(jnp.max(jnp.abs(out - ref))))

    # ---- visual branch (5 streams, no adapters / fusion) ----
    xs = [jax.random.normal(jax.random.fold_in(kv, i),
                            (seq_len, batch, d_model), jnp.float32)
          for i in range(5)]
    outs, _ = residual_attention_block_forward((tuple(xs), None), prep, n_head)
    outs = jax.block_until_ready(outs)
    for xi, oi in zip(xs, outs):
        ri = _reference(xi, params, n_head)
        assert jnp.allclose(oi, ri, atol=2e-2, rtol=2e-2), (
            float(jnp.max(jnp.abs(oi - ri))))

    print("KERNEL_OK")
</pallas_src>

<mosaic_0001>
module attributes {stable_mosaic.version = 11 : i64} {
  func.func @_residual_attention_block_kernel(%arg0: i32, %arg1: memref<1x8x64xf32, #tpu.memory_space<vmem>>, %arg2: memref<1x64xf32, #tpu.memory_space<vmem>>, %arg3: memref<1x64xf32, #tpu.memory_space<vmem>>, %arg4: memref<64x192xbf16, #tpu.memory_space<vmem>>, %arg5: memref<1x192xf32, #tpu.memory_space<vmem>>, %arg6: memref<64x64xbf16, #tpu.memory_space<vmem>>, %arg7: memref<1x64xf32, #tpu.memory_space<vmem>>, %arg8: memref<1x64xf32, #tpu.memory_space<vmem>>, %arg9: memref<1x64xf32, #tpu.memory_space<vmem>>, %arg10: memref<64x256xbf16, #tpu.memory_space<vmem>>, %arg11: memref<1x256xf32, #tpu.memory_space<vmem>>, %arg12: memref<256x64xbf16, #tpu.memory_space<vmem>>, %arg13: memref<1x64xf32, #tpu.memory_space<vmem>>, %arg14: memref<1x8x64xf32, #tpu.memory_space<vmem>>) attributes {dimension_semantics = [#tpu.dimension_semantics<parallel>], iteration_bounds = array<i64: 2>, scalar_prefetch = 0 : i64, scratch_operands = 0 : i64, tpu.core_type = #tpu.core_type<tc>, window_params = [{transform_indices = @transform_0, window_bounds = array<i64: 1, 8, 64>}, {pipeline_mode = #tpu.pipeline_mode<synchronous>, transform_indices = @transform_1, window_bounds = array<i64: 1, 64>}, {pipeline_mode = #tpu.pipeline_mode<synchronous>, transform_indices = @transform_2, window_bounds = array<i64: 1, 64>}, {pipeline_mode = #tpu.pipeline_mode<synchronous>, transform_indices = @transform_3, window_bounds = array<i64: 64, 192>}, {pipeline_mode = #tpu.pipeline_mode<synchronous>, transform_indices = @transform_4, window_bounds = array<i64: 1, 192>}, {pipeline_mode = #tpu.pipeline_mode<synchronous>, transform_indices = @transform_5, window_bounds = array<i64: 64, 64>}, {pipeline_mode = #tpu.pipeline_mode<synchronous>, transform_indices = @transform_6, window_bounds = array<i64: 1, 64>}, {pipeline_mode = #tpu.pipeline_mode<synchronous>, transform_indices = @transform_7, window_bounds = array<i64: 1, 64>}, {pipeline_mode = #tpu.pipeline_mode<synchronous>, transform_indices = @transform_8, window_bounds = array<i64: 1, 64>}, {pipeline_mode = #tpu.pipeline_mode<synchronous>, transform_indices = @transform_9, window_bounds = array<i64: 64, 256>}, {pipeline_mode = #tpu.pipeline_mode<synchronous>, transform_indices = @transform_10, window_bounds = array<i64: 1, 256>}, {pipeline_mode = #tpu.pipeline_mode<synchronous>, transform_indices = @transform_11, window_bounds = array<i64: 256, 64>}, {pipeline_mode = #tpu.pipeline_mode<synchronous>, transform_indices = @transform_12, window_bounds = array<i64: 1, 64>}, {transform_indices = @transform_13, window_bounds = array<i64: 1, 8, 64>}]} {
    %c0 = arith.constant 0 : index
    %c0_0 = arith.constant 0 : index
    %c0_1 = arith.constant 0 : index
    %0 = vector.load %arg1[%c0, %c0_0, %c0_1] : memref<1x8x64xf32, #tpu.memory_space<vmem>>, vector<1x8x64xf32>
    %1 = vector.shape_cast %0 : vector<1x8x64xf32> to vector<8x64xf32>
    %c0_2 = arith.constant 0 : index
    %c0_3 = arith.constant 0 : index
    %2 = vector.load %arg2[%c0_2, %c0_3] : memref<1x64xf32, #tpu.memory_space<vmem>>, vector<1x64xf32>
    %c0_4 = arith.constant 0 : index
    %c0_5 = arith.constant 0 : index
    %3 = vector.load %arg3[%c0_4, %c0_5] : memref<1x64xf32, #tpu.memory_space<vmem>>, vector<1x64xf32>
    %cst = arith.constant dense<0.000000e+00> : vector<8xf32>
    %4 = vector.multi_reduction <add>, %1, %cst [1] : vector<8x64xf32> to vector<8xf32>
    %5 = vector.shape_cast %4 : vector<8xf32> to vector<8x1xf32>
    %cst_6 = arith.constant 6.400000e+01 : f32
    %6 = vector.broadcast %cst_6 : f32 to vector<8x1xf32>
    %7 = arith.divf %5, %6 : vector<8x1xf32>
    %8 = arith.mulf %1, %1 : vector<8x64xf32>
    %cst_7 = arith.constant dense<0.000000e+00> : vector<8xf32>
    %9 = vector.multi_reduction <add>, %8, %cst_7 [1] : vector<8x64xf32> to vector<8xf32>
    %10 = vector.shape_cast %9 : vector<8xf32> to vector<8x1xf32>
    %cst_8 = arith.constant 6.400000e+01 : f32
    %11 = vector.broadcast %cst_8 : f32 to vector<8x1xf32>
    %12 = arith.divf %10, %11 : vector<8x1xf32>
    %13 = arith.mulf %7, %7 : vector<8x1xf32>
    %14 = arith.subf %12, %13 : vector<8x1xf32>
    %cst_9 = arith.constant 0.000000e+00 : f32
    %15 = vector.broadcast %cst_9 : f32 to vector<8x1xf32>
    %16 = arith.maximumf %14, %15 : vector<8x1xf32>
    %17 = vector.broadcast %7 : vector<8x1xf32> to vector<8x64xf32>
    %18 = arith.subf %1, %17 : vector<8x64xf32>
    %cst_10 = arith.constant 9.99999974E-6 : f32
    %19 = vector.broadcast %cst_10 : f32 to vector<8x1xf32>
    %20 = arith.addf %16, %19 : vector<8x1xf32>
    %21 = math.rsqrt %20 : vector<8x1xf32>
    %22 = vector.broadcast %21 : vector<8x1xf32> to vector<8x64xf32>
    %23 = arith.mulf %18, %22 : vector<8x64xf32>
    %24 = vector.broadcast %2 : vector<1x64xf32> to vector<8x64xf32>
    %25 = arith.mulf %23, %24 : vector<8x64xf32>
    %26 = vector.broadcast %3 : vector<1x64xf32> to vector<8x64xf32>
    %27 = arith.addf %25, %26 : vector<8x64xf32>
    %28 = arith.truncf %27 : vector<8x64xf32> to vector<8x64xbf16>
    %c0_11 = arith.constant 0 : index
    %c0_12 = arith.constant 0 : index
    %29 = vector.load %arg4[%c0_11, %c0_12] : memref<64x192xbf16, #tpu.memory_space<vmem>>, vector<64x192xbf16>
    %cst_13 = arith.constant dense<0.000000e+00> : vector<8x192xf32>
    %30 = tpu.matmul %28, %29, %cst_13 {dimension_numbers = #tpu.dot_dimension_numbers<[1], [0], [0], [1], [0, 0, 1, 1], [], []>} : vector<8x64xbf16>, vector<64x192xbf16>, vector<8x192xf32> -> vector<8x192xf32>
    %c0_14 = arith.constant 0 : index
    %c0_15 = arith.constant 0 : index
    %31 = vector.load %arg5[%c0_14, %c0_15] : memref<1x192xf32, #tpu.memory_space<vmem>>, vector<1x192xf32>
    %32 = vector.broadcast %31 : vector<1x192xf32> to vector<8x192xf32>
    %33 = arith.addf %30, %32 : vector<8x192xf32>
    %34 = arith.truncf %33 : vector<8x192xf32> to vector<8x192xbf16>
    %35 = vector.extract_strided_slice %34 {offsets = [0, 0], sizes = [8, 64], strides = [1, 1]} : vector<8x192xbf16> to vector<8x64xbf16>
    %36 = vector.shape_cast %35 : vector<8x64xbf16> to vector<1x8x64xbf16>
    %37 = vector.extract_strided_slice %34 {offsets = [0, 64], sizes = [8, 64], strides = [1, 1]} : vector<8x192xbf16> to vector<8x64xbf16>
    %38 = vector.shape_cast %37 : vector<8x64xbf16> to vector<1x8x64xbf16>
    %39 = vector.extract_strided_slice %34 {offsets = [0, 128], sizes = [8, 64], strides = [1, 1]} : vector<8x192xbf16> to vector<8x64xbf16>
    %40 = vector.shape_cast %39 : vector<8x64xbf16> to vector<1x8x64xbf16>
    %41 = vector.extract_strided_slice %36 {offsets = [0, 0, 0], sizes = [1, 8, 16], strides = [1, 1, 1]} : vector<1x8x64xbf16> to vector<1x8x16xbf16>
    %42 = vector.extract_strided_slice %38 {offsets = [0, 0, 0], sizes = [1, 8, 16], strides = [1, 1, 1]} : vector<1x8x64xbf16> to vector<1x8x16xbf16>
    %43 = vector.extract_strided_slice %40 {offsets = [0, 0, 0], sizes = [1, 8, 16], strides = [1, 1, 1]} : vector<1x8x64xbf16> to vector<1x8x16xbf16>
    "tpu.trace_start"() <{level = 10 : i32, message = "bqd,bkd->bqk"}> : () -> ()
    %cst_16 = arith.constant dense<0.000000e+00> : vector<1x8x8xf32>
    %44 = tpu.matmul %41, %42, %cst_16 {dimension_numbers = #tpu.dot_dimension_numbers<[2], [2], [1], [1], [0, 0, 0, 1, 1, 1], [0], [0]>} : vector<1x8x16xbf16>, vector<1x8x16xbf16>, vector<1x8x8xf32> -> vector<1x8x8xf32>
    "tpu.trace_stop"() : () -> ()
    %cst_17 = arith.constant dense<0xFF800000> : vector<1x8xf32>
    %45 = vector.multi_reduction <maximumf>, %44, %cst_17 [2] : vector<1x8x8xf32> to vector<1x8xf32>
    %46 = vector.shape_cast %45 : vector<1x8xf32> to vector<1x8x1xf32>
    %47 = vector.broadcast %46 : vector<1x8x1xf32> to vector<1x8x8xf32>
    %48 = arith.subf %44, %47 : vector<1x8x8xf32>
    %49 = math.exp %48 : vector<1x8x8xf32>
    %cst_18 = arith.constant dense<0.000000e+00> : vector<1x8xf32>
    %50 = vector.multi_reduction <add>, %49, %cst_18 [2] : vector<1x8x8xf32> to vector<1x8xf32>
    %51 = vector.shape_cast %50 : vector<1x8xf32> to vector<1x8x1xf32>
    %52 = tpu.reciprocal %51 {approx = true} : vector<1x8x1xf32> -> vector<1x8x1xf32>
    %53 = vector.broadcast %52 : vector<1x8x1xf32> to vector<1x8x8xf32>
    %54 = arith.mulf %49, %53 : vector<1x8x8xf32>
    %55 = arith.truncf %54 : vector<1x8x8xf32> to vector<1x8x8xbf16>
    "tpu.trace_start"() <{level = 10 : i32, message = "bqk,bkd->bqd"}> : () -> ()
    %cst_19 = arith.constant dense<0.000000e+00> : vector<1x8x16xf32>
    %56 = tpu.matmul %55, %43, %cst_19 {dimension_numbers = #tpu.dot_dimension_numbers<[2], [1], [1], [2], [0, 0, 0, 1, 1, 2], [0], [0]>} : vector<1x8x8xbf16>, vector<1x8x16xbf16>, vector<1x8x16xf32> -> vector<1x8x16xf32>
    "tpu.trace_stop"() : () -> ()
    %57 = vector.extract_strided_slice %36 {offsets = [0, 0, 16], sizes = [1, 8, 16], strides = [1, 1, 1]} : vector<1x8x64xbf16> to vector<1x8x16xbf16>
    %58 = vector.extract_strided_slice %38 {offsets = [0, 0, 16], sizes = [1, 8, 16], strides = [1, 1, 1]} : vector<1x8x64xbf16> to vector<1x8x16xbf16>
    %59 = vector.extract_strided_slice %40 {offsets = [0, 0, 16], sizes = [1, 8, 16], strides = [1, 1, 1]} : vector<1x8x64xbf16> to vector<1x8x16xbf16>
    "tpu.trace_start"() <{level = 10 : i32, message = "bqd,bkd->bqk"}> : () -> ()
    %cst_20 = arith.constant dense<0.000000e+00> : vector<1x8x8xf32>
    %60 = tpu.matmul %57, %58, %cst_20 {dimension_numbers = #tpu.dot_dimension_numbers<[2], [2], [1], [1], [0, 0, 0, 1, 1, 1], [0], [0]>} : vector<1x8x16xbf16>, vector<1x8x16xbf16>, vector<1x8x8xf32> -> vector<1x8x8xf32>
    "tpu.trace_stop"() : () -> ()
    %cst_21 = arith.constant dense<0xFF800000> : vector<1x8xf32>
    %61 = vector.multi_reduction <maximumf>, %60, %cst_21 [2] : vector<1x8x8xf32> to vector<1x8xf32>
    %62 = vector.shape_cast %61 : vector<1x8xf32> to vector<1x8x1xf32>
    %63 = vector.broadcast %62 : vector<1x8x1xf32> to vector<1x8x8xf32>
    %64 = arith.subf %60, %63 : vector<1x8x8xf32>
    %65 = math.exp %64 : vector<1x8x8xf32>
    %cst_22 = arith.constant dense<0.000000e+00> : vector<1x8xf32>
    %66 = vector.multi_reduction <add>, %65, %cst_22 [2] : vector<1x8x8xf32> to vector<1x8xf32>
    %67 = vector.shape_cast %66 : vector<1x8xf32> to vector<1x8x1xf32>
    %68 = tpu.reciprocal %67 {approx = true} : vector<1x8x1xf32> -> vector<1x8x1xf32>
    %69 = vector.broadcast %68 : vector<1x8x1xf32> to vector<1x8x8xf32>
    %70 = arith.mulf %65, %69 : vector<1x8x8xf32>
    %71 = arith.truncf %70 : vector<1x8x8xf32> to vector<1x8x8xbf16>
    "tpu.trace_start"() <{level = 10 : i32, message = "bqk,bkd->bqd"}> : () -> ()
    %cst_23 = arith.constant dense<0.000000e+00> : vector<1x8x16xf32>
    %72 = tpu.matmul %71, %59, %cst_23 {dimension_numbers = #tpu.dot_dimension_numbers<[2], [1], [1], [2], [0, 0, 0, 1, 1, 2], [0], [0]>} : vector<1x8x8xbf16>, vector<1x8x16xbf16>, vector<1x8x16xf32> -> vector<1x8x16xf32>
    "tpu.trace_stop"() : () -> ()
    %73 = vector.extract_strided_slice %36 {offsets = [0, 0, 32], sizes = [1, 8, 16], strides = [1, 1, 1]} : vector<1x8x64xbf16> to vector<1x8x16xbf16>
    %74 = vector.extract_strided_slice %38 {offsets = [0, 0, 32], sizes = [1, 8, 16], strides = [1, 1, 1]} : vector<1x8x64xbf16> to vector<1x8x16xbf16>
    %75 = vector.extract_strided_slice %40 {offsets = [0, 0, 32], sizes = [1, 8, 16], strides = [1, 1, 1]} : vector<1x8x64xbf16> to vector<1x8x16xbf16>
    "tpu.trace_start"() <{level = 10 : i32, message = "bqd,bkd->bqk"}> : () -> ()
    %cst_24 = arith.constant dense<0.000000e+00> : vector<1x8x8xf32>
    %76 = tpu.matmul %73, %74, %cst_24 {dimension_numbers = #tpu.dot_dimension_numbers<[2], [2], [1], [1], [0, 0, 0, 1, 1, 1], [0], [0]>} : vector<1x8x16xbf16>, vector<1x8x16xbf16>, vector<1x8x8xf32> -> vector<1x8x8xf32>
    "tpu.trace_stop"() : () -> ()
    %cst_25 = arith.constant dense<0xFF800000> : vector<1x8xf32>
    %77 = vector.multi_reduction <maximumf>, %76, %cst_25 [2] : vector<1x8x8xf32> to vector<1x8xf32>
    %78 = vector.shape_cast %77 : vector<1x8xf32> to vector<1x8x1xf32>
    %79 = vector.broadcast %78 : vector<1x8x1xf32> to vector<1x8x8xf32>
    %80 = arith.subf %76, %79 : vector<1x8x8xf32>
    %81 = math.exp %80 : vector<1x8x8xf32>
    %cst_26 = arith.constant dense<0.000000e+00> : vector<1x8xf32>
    %82 = vector.multi_reduction <add>, %81, %cst_26 [2] : vector<1x8x8xf32> to vector<1x8xf32>
    %83 = vector.shape_cast %82 : vector<1x8xf32> to vector<1x8x1xf32>
    %84 = tpu.reciprocal %83 {approx = true} : vector<1x8x1xf32> -> vector<1x8x1xf32>
    %85 = vector.broadcast %84 : vector<1x8x1xf32> to vector<1x8x8xf32>
    %86 = arith.mulf %81, %85 : vector<1x8x8xf32>
    %87 = arith.truncf %86 : vector<1x8x8xf32> to vector<1x8x8xbf16>
    "tpu.trace_start"() <{level = 10 : i32, message = "bqk,bkd->bqd"}> : () -> ()
    %cst_27 = arith.constant dense<0.000000e+00> : vector<1x8x16xf32>
    %88 = tpu.matmul %87, %75, %cst_27 {dimension_numbers = #tpu.dot_dimension_numbers<[2], [1], [1], [2], [0, 0, 0, 1, 1, 2], [0], [0]>} : vector<1x8x8xbf16>, vector<1x8x16xbf16>, vector<1x8x16xf32> -> vector<1x8x16xf32>
    "tpu.trace_stop"() : () -> ()
    %89 = vector.extract_strided_slice %36 {offsets = [0, 0, 48], sizes = [1, 8, 16], strides = [1, 1, 1]} : vector<1x8x64xbf16> to vector<1x8x16xbf16>
    %90 = vector.extract_strided_slice %38 {offsets = [0, 0, 48], sizes = [1, 8, 16], strides = [1, 1, 1]} : vector<1x8x64xbf16> to vector<1x8x16xbf16>
    %91 = vector.extract_strided_slice %40 {offsets = [0, 0, 48], sizes = [1, 8, 16], strides = [1, 1, 1]} : vector<1x8x64xbf16> to vector<1x8x16xbf16>
    "tpu.trace_start"() <{level = 10 : i32, message = "bqd,bkd->bqk"}> : () -> ()
    %cst_28 = arith.constant dense<0.000000e+00> : vector<1x8x8xf32>
    %92 = tpu.matmul %89, %90, %cst_28 {dimension_numbers = #tpu.dot_dimension_numbers<[2], [2], [1], [1], [0, 0, 0, 1, 1, 1], [0], [0]>} : vector<1x8x16xbf16>, vector<1x8x16xbf16>, vector<1x8x8xf32> -> vector<1x8x8xf32>
    "tpu.trace_stop"() : () -> ()
    %cst_29 = arith.constant dense<0xFF800000> : vector<1x8xf32>
    %93 = vector.multi_reduction <maximumf>, %92, %cst_29 [2] : vector<1x8x8xf32> to vector<1x8xf32>
    %94 = vector.shape_cast %93 : vector<1x8xf32> to vector<1x8x1xf32>
    %95 = vector.broadcast %94 : vector<1x8x1xf32> to vector<1x8x8xf32>
    %96 = arith.subf %92, %95 : vector<1x8x8xf32>
    %97 = math.exp %96 : vector<1x8x8xf32>
    %cst_30 = arith.constant dense<0.000000e+00> : vector<1x8xf32>
    %98 = vector.multi_reduction <add>, %97, %cst_30 [2] : vector<1x8x8xf32> to vector<1x8xf32>
    %99 = vector.shape_cast %98 : vector<1x8xf32> to vector<1x8x1xf32>
    %100 = tpu.reciprocal %99 {approx = true} : vector<1x8x1xf32> -> vector<1x8x1xf32>
    %101 = vector.broadcast %100 : vector<1x8x1xf32> to vector<1x8x8xf32>
    %102 = arith.mulf %97, %101 : vector<1x8x8xf32>
    %103 = arith.truncf %102 : vector<1x8x8xf32> to vector<1x8x8xbf16>
    "tpu.trace_start"() <{level = 10 : i32, message = "bqk,bkd->bqd"}> : () -> ()
    %cst_31 = arith.constant dense<0.000000e+00> : vector<1x8x16xf32>
    %104 = tpu.matmul %103, %91, %cst_31 {dimension_numbers = #tpu.dot_dimension_numbers<[2], [1], [1], [2], [0, 0, 0, 1, 1, 2], [0], [0]>} : vector<1x8x8xbf16>, vector<1x8x16xbf16>, vector<1x8x16xf32> -> vector<1x8x16xf32>
    "tpu.trace_stop"() : () -> ()
    %105 = tpu.concatenate %56, %72, %88, %104 in 2 : vector<1x8x16xf32>, vector<1x8x16xf32>, vector<1x8x16xf32>, vector<1x8x16xf32> -> vector<1x8x64xf32>
    %106 = vector.shape_cast %105 : vector<1x8x64xf32> to vector<8x64xf32>
    %107 = arith.truncf %106 : vector<8x64xf32> to vector<8x64xbf16>
    %c0_32 = arith.constant 0 : index
    %c0_33 = arith.constant 0 : index
    %108 = vector.load %arg6[%c0_32, %c0_33] : memref<64x64xbf16, #tpu.memory_space<vmem>>, vector<64x64xbf16>
    %cst_34 = arith.constant dense<0.000000e+00> : vector<8x64xf32>
    %109 = tpu.matmul %107, %108, %cst_34 {dimension_numbers = #tpu.dot_dimension_numbers<[1], [0], [0], [1], [0, 0, 1, 1], [], []>} : vector<8x64xbf16>, vector<64x64xbf16>, vector<8x64xf32> -> vector<8x64xf32>
    %c0_35 = arith.constant 0 : index
    %c0_36 = arith.constant 0 : index
    %110 = vector.load %arg7[%c0_35, %c0_36] : memref<1x64xf32, #tpu.memory_space<vmem>>, vector<1x64xf32>
    %111 = vector.broadcast %110 : vector<1x64xf32> to vector<8x64xf32>
    %112 = arith.addf %109, %111 : vector<8x64xf32>
    %113 = arith.addf %1, %112 : vector<8x64xf32>
    %c0_37 = arith.constant 0 : index
    %c0_38 = arith.constant 0 : index
    %114 = vector.load %arg8[%c0_37, %c0_38] : memref<1x64xf32, #tpu.memory_space<vmem>>, vector<1x64xf32>
    %c0_39 = arith.constant 0 : index
    %c0_40 = arith.constant 0 : index
    %115 = vector.load %arg9[%c0_39, %c0_40] : memref<1x64xf32, #tpu.memory_space<vmem>>, vector<1x64xf32>
    %cst_41 = arith.constant dense<0.000000e+00> : vector<8xf32>
    %116 = vector.multi_reduction <add>, %113, %cst_41 [1] : vector<8x64xf32> to vector<8xf32>
    %117 = vector.shape_cast %116 : vector<8xf32> to vector<8x1xf32>
    %cst_42 = arith.constant 6.400000e+01 : f32
    %118 = vector.broadcast %cst_42 : f32 to vector<8x1xf32>
    %119 = arith.divf %117, %118 : vector<8x1xf32>
    %120 = arith.mulf %113, %113 : vector<8x64xf32>
    %cst_43 = arith.constant dense<0.000000e+00> : vector<8xf32>
    %121 = vector.multi_reduction <add>, %120, %cst_43 [1] : vector<8x64xf32> to vector<8xf32>
    %122 = vector.shape_cast %121 : vector<8xf32> to vector<8x1xf32>
    %cst_44 = arith.constant 6.400000e+01 : f32
    %123 = vector.broadcast %cst_44 : f32 to vector<8x1xf32>
    %124 = arith.divf %122, %123 : vector<8x1xf32>
    %125 = arith.mulf %119, %119 : vector<8x1xf32>
    %126 = arith.subf %124, %125 : vector<8x1xf32>
    %cst_45 = arith.constant 0.000000e+00 : f32
    %127 = vector.broadcast %cst_45 : f32 to vector<8x1xf32>
    %128 = arith.maximumf %126, %127 : vector<8x1xf32>
    %129 = vector.broadcast %119 : vector<8x1xf32> to vector<8x64xf32>
    %130 = arith.subf %113, %129 : vector<8x64xf32>
    %cst_46 = arith.constant 9.99999974E-6 : f32
    %131 = vector.broadcast %cst_46 : f32 to vector<8x1xf32>
    %132 = arith.addf %128, %131 : vector<8x1xf32>
    %133 = math.rsqrt %132 : vector<8x1xf32>
    %134 = vector.broadcast %133 : vector<8x1xf32> to vector<8x64xf32>
    %135 = arith.mulf %130, %134 : vector<8x64xf32>
    %136 = vector.broadcast %114 : vector<1x64xf32> to vector<8x64xf32>
    %137 = arith.mulf %135, %136 : vector<8x64xf32>
    %138 = vector.broadcast %115 : vector<1x64xf32> to vector<8x64xf32>
    %139 = arith.addf %137, %138 : vector<8x64xf32>
    %140 = arith.truncf %139 : vector<8x64xf32> to vector<8x64xbf16>
    %c0_47 = arith.constant 0 : index
    %c0_48 = arith.constant 0 : index
    %141 = vector.load %arg10[%c0_47, %c0_48] : memref<64x256xbf16, #tpu.memory_space<vmem>>, vector<64x256xbf16>
    %cst_49 = arith.constant dense<0.000000e+00> : vector<8x256xf32>
    %142 = tpu.matmul %140, %141, %cst_49 {dimension_numbers = #tpu.dot_dimension_numbers<[1], [0], [0], [1], [0, 0, 1, 1], [], []>} : vector<8x64xbf16>, vector<64x256xbf16>, vector<8x256xf32> -> vector<8x256xf32>
    %c0_50 = arith.constant 0 : index
    %c0_51 = arith.constant 0 : index
    %143 = vector.load %arg11[%c0_50, %c0_51] : memref<1x256xf32, #tpu.memory_space<vmem>>, vector<1x256xf32>
    %144 = vector.broadcast %143 : vector<1x256xf32> to vector<8x256xf32>
    %145 = arith.addf %142, %144 : vector<8x256xf32>
    %cst_52 = arith.constant 1.702000e+00 : f32
    %146 = vector.broadcast %cst_52 : f32 to vector<8x256xf32>
    %147 = arith.mulf %146, %145 : vector<8x256xf32>
    %148 = arith.negf %147 : vector<8x256xf32>
    %149 = math.exp %148 : vector<8x256xf32>
    %cst_53 = arith.constant 1.000000e+00 : f32
    %150 = vector.broadcast %cst_53 : f32 to vector<8x256xf32>
    %151 = arith.addf %150, %149 : vector<8x256xf32>
    %152 = arith.divf %150, %151 : vector<8x256xf32>
    %153 = arith.mulf %145, %152 : vector<8x256xf32>
    %154 = arith.truncf %153 : vector<8x256xf32> to vector<8x256xbf16>
    %c0_54 = arith.constant 0 : index
    %c0_55 = arith.constant 0 : index
    %155 = vector.load %arg12[%c0_54, %c0_55] : memref<256x64xbf16, #tpu.memory_space<vmem>>, vector<256x64xbf16>
    %cst_56 = arith.constant dense<0.000000e+00> : vector<8x64xf32>
    %156 = tpu.matmul %154, %155, %cst_56 {dimension_numbers = #tpu.dot_dimension_numbers<[1], [0], [0], [1], [0, 0, 1, 1], [], []>} : vector<8x256xbf16>, vector<256x64xbf16>, vector<8x64xf32> -> vector<8x64xf32>
    %c0_57 = arith.constant 0 : index
    %c0_58 = arith.constant 0 : index
    %157 = vector.load %arg13[%c0_57, %c0_58] : memref<1x64xf32, #tpu.memory_space<vmem>>, vector<1x64xf32>
    %158 = vector.broadcast %157 : vector<1x64xf32> to vector<8x64xf32>
    %159 = arith.addf %156, %158 : vector<8x64xf32>
    %160 = arith.addf %113, %159 : vector<8x64xf32>
    %c0_59 = arith.constant 0 : index
    %c0_60 = arith.constant 0 : index
    %c0_61 = arith.constant 0 : index
    %161 = vector.load %arg14[%c0_59, %c0_60, %c0_61] : memref<1x8x64xf32, #tpu.memory_space<vmem>>, vector<1x8x64xf32>
    %162 = vector.shape_cast %161 : vector<1x8x64xf32> to vector<8x64xf32>
    %163 = vector.shape_cast %160 : vector<8x64xf32> to vector<1x8x64xf32>
    tpu.vector_store %arg14[%c0_59, %c0_60, %c0_61], %163 {strides = array<i32>} : memref<1x8x64xf32, #tpu.memory_space<vmem>>, vector<1x8x64xf32>,
    return
  }
  func.func @transform_0(%arg0: i32) -> (i32, i32, i32) {
    %c0_i32 = arith.constant 0 : i32
    %c0_i32_0 = arith.constant 0 : i32
    %c0_i32_1 = arith.constant 0 : i32
    return %arg0, %c0_i32, %c0_i32_0 : i32, i32, i32
  }
  func.func @transform_1(%arg0: i32) -> (i32, i32) {
    %c0_i32 = arith.constant 0 : i32
    %c0_i32_0 = arith.constant 0 : i32
    %c0_i32_1 = arith.constant 0 : i32
    return %c0_i32, %c0_i32_0 : i32, i32
  }
  func.func @transform_2(%arg0: i32) -> (i32, i32) {
    %c0_i32 = arith.constant 0 : i32
    %c0_i32_0 = arith.constant 0 : i32
    %c0_i32_1 = arith.constant 0 : i32
    return %c0_i32, %c0_i32_0 : i32, i32
  }
  func.func @transform_3(%arg0: i32) -> (i32, i32) {
    %c0_i32 = arith.constant 0 : i32
    %c0_i32_0 = arith.constant 0 : i32
    %c0_i32_1 = arith.constant 0 : i32
    return %c0_i32, %c0_i32_0 : i32, i32
  }
  func.func @transform_4(%arg0: i32) -> (i32, i32) {
    %c0_i32 = arith.constant 0 : i32
    %c0_i32_0 = arith.constant 0 : i32
    %c0_i32_1 = arith.constant 0 : i32
    return %c0_i32, %c0_i32_0 : i32, i32
  }
  func.func @transform_5(%arg0: i32) -> (i32, i32) {
    %c0_i32 = arith.constant 0 : i32
    %c0_i32_0 = arith.constant 0 : i32
    %c0_i32_1 = arith.constant 0 : i32
    return %c0_i32, %c0_i32_0 : i32, i32
  }
  func.func @transform_6(%arg0: i32) -> (i32, i32) {
    %c0_i32 = arith.constant 0 : i32
    %c0_i32_0 = arith.constant 0 : i32
    %c0_i32_1 = arith.constant 0 : i32
    return %c0_i32, %c0_i32_0 : i32, i32
  }
  func.func @transform_7(%arg0: i32) -> (i32, i32) {
    %c0_i32 = arith.constant 0 : i32
    %c0_i32_0 = arith.constant 0 : i32
    %c0_i32_1 = arith.constant 0 : i32
    return %c0_i32, %c0_i32_0 : i32, i32
  }
  func.func @transform_8(%arg0: i32) -> (i32, i32) {
    %c0_i32 = arith.constant 0 : i32
    %c0_i32_0 = arith.constant 0 : i32
    %c0_i32_1 = arith.constant 0 : i32
    return %c0_i32, %c0_i32_0 : i32, i32
  }
  func.func @transform_9(%arg0: i32) -> (i32, i32) {
    %c0_i32 = arith.constant 0 : i32
    %c0_i32_0 = arith.constant 0 : i32
    %c0_i32_1 = arith.constant 0 : i32
    return %c0_i32, %c0_i32_0 : i32, i32
  }
  func.func @transform_10(%arg0: i32) -> (i32, i32) {
    %c0_i32 = arith.constant 0 : i32
    %c0_i32_0 = arith.constant 0 : i32
    %c0_i32_1 = arith.constant 0 : i32
    return %c0_i32, %c0_i32_0 : i32, i32
  }
  func.func @transform_11(%arg0: i32) -> (i32, i32) {
    %c0_i32 = arith.constant 0 : i32
    %c0_i32_0 = arith.constant 0 : i32
    %c0_i32_1 = arith.constant 0 : i32
    return %c0_i32, %c0_i32_0 : i32, i32
  }
  func.func @transform_12(%arg0: i32) -> (i32, i32) {
    %c0_i32 = arith.constant 0 : i32
    %c0_i32_0 = arith.constant 0 : i32
    %c0_i32_1 = arith.constant 0 : i32
    return %c0_i32, %c0_i32_0 : i32, i32
  }
  func.func @transform_13(%arg0: i32) -> (i32, i32, i32) {
    %c0_i32 = arith.constant 0 : i32
    %c0_i32_0 = arith.constant 0 : i32
    %c0_i32_1 = arith.constant 0 : i32
    return %arg0, %c0_i32, %c0_i32_0 : i32, i32, i32
  }
}

</mosaic_0001>

<llo_original>
// kernel: tpu_custom_call.1
$region0: #{tpu_custom_call.1}
  #allocation0 [shape = 'u32[]', space=smem, size = 0x4, offset = 0x4, fixed_abs, tag = 'smem constant byte address 0x4 - core index']
  #allocation1 [shape = 'u32[144,128]{1,0:T(1,128)}', space=vmem, size = 0x12000, scoped, tag = 'internal scratch']
  %s0 = inlined_call_operand.vmem [shape: f32[2,8,64], index: 0, kind: input, shape index: {}]
  %s1 = inlined_call_operand.vmem [shape: f32[1,64], index: 1, kind: input, shape index: {}]
  %s2 = inlined_call_operand.vmem [shape: f32[1,64], index: 2, kind: input, shape index: {}]
  %s3 = inlined_call_operand.vmem [shape: bf16[64,192], index: 3, kind: input, shape index: {}]
  %s4 = inlined_call_operand.vmem [shape: f32[1,192], index: 4, kind: input, shape index: {}]
  %s5 = inlined_call_operand.vmem [shape: bf16[64,64], index: 5, kind: input, shape index: {}]
  %s6 = inlined_call_operand.vmem [shape: f32[1,64], index: 6, kind: input, shape index: {}]
  %s7 = inlined_call_operand.vmem [shape: f32[1,64], index: 7, kind: input, shape index: {}]
  %s8 = inlined_call_operand.vmem [shape: f32[1,64], index: 8, kind: input, shape index: {}]
  %s9 = inlined_call_operand.vmem [shape: bf16[64,256], index: 9, kind: input, shape index: {}]
  %s10 = inlined_call_operand.vmem [shape: f32[1,256], index: 10, kind: input, shape index: {}]
  %s11 = inlined_call_operand.vmem [shape: bf16[256,64], index: 11, kind: input, shape index: {}]
  %s12 = inlined_call_operand.vmem [shape: f32[1,64], index: 12, kind: input, shape index: {}]
  %s13 = inlined_call_operand.hbm [shape: f32[2,8,64], index: 13, kind: output, shape index: {}]
  %s14 = sld [smem:[#allocation0]]
  $region85: #{tpu_custom_call.1} parent=0
    _
  %s16 = ssub.s32 1, %s14
  %s17 = scalar_select 0, %s16, %s14
  $region1: #{tpu_custom_call.1} parent=0
    #allocation2 [shape = 'u8[8192]{0}', space=vmem, size = 0x2000, scoped, tag = 'output window, operand 0']
    #allocation3 [shape = 's32[2]{0}', space=sflag, size = 0x8, scoped, tag = 'scoped memory for tpu_custom_call.1']
    %18 = vsyncpa [#allocation3], 0
    %s19 = scalar_lea.sflag [#allocation3], 1
    %20 = vsyncpa %s19, 0
    loop: start=0, step=1, limit=4
    $region2: #{tpu_custom_call.1} parent=1 // loop_pre_header
      _
    $region3: #{tpu_custom_call.1} parent=1 // loop_header
      %s22 = sphi 0, %s26
      %p23 = scmp.ge.s32.totalorder %s22, 4
      %s32 = sphi 0, %s34
      %s35 = sphi 0, %s32
      %s36 = sphi 0, %s35
      %s52 = sphi 0, %s36
      %s56 = sphi 0, %s56
      %s58 = sphi 0, %s56
      %s59 = sphi 0, %s58
      %s73 = sphi 0, %s59
      %s77 = sphi 0, %s77
      %s79 = sphi 0, %s77
      %s80 = sphi 0, %s79
      %s94 = sphi 0, %s80
      %s98 = sphi 0, %s98
      %s100 = sphi 0, %s98
      %s101 = sphi 0, %s100
      %s115 = sphi 0, %s101
      %s119 = sphi 0, %s119
      %s121 = sphi 0, %s119
      %s122 = sphi 0, %s121
      %s136 = sphi 0, %s122
      %s140 = sphi 0, %s140
      %s142 = sphi 0, %s140
      %s143 = sphi 0, %s142
      %s157 = sphi 0, %s143
      %s161 = sphi 0, %s161
      %s163 = sphi 0, %s161
      %s164 = sphi 0, %s163
      %s178 = sphi 0, %s164
      %s182 = sphi 0, %s182
      %s184 = sphi 0, %s182
      %s185 = sphi 0, %s184
      %s199 = sphi 0, %s185
      %s203 = sphi 0, %s203
      %s205 = sphi 0, %s203
      %s206 = sphi 0, %s205
      %s220 = sphi 0, %s206
      %s224 = sphi 0, %s224
      %s226 = sphi 0, %s224
      %s227 = sphi 0, %s226
      %s241 = sphi 0, %s227
      %s245 = sphi 0, %s245
      %s247 = sphi 0, %s245
      %s248 = sphi 0, %s247
      %s262 = sphi 0, %s248
      %s266 = sphi 0, %s266
      %s268 = sphi 0, %s266
      %s269 = sphi 0, %s268
      %s283 = sphi 0, %s269
      %s287 = sphi 0, %s287
      %s289 = sphi 0, %s287
      %s290 = sphi 0, %s289
      %s304 = sphi 0, %s290
      %s310 = sphi 0, %s312
      %s313 = sphi 0, %s310
      %s314 = sphi 0, %s313
      %s330 = sphi 0, %s314
    $region4: #{tpu_custom_call.1} parent=1 // loop_header_branch
      %25 = sbr.rel (%p23) target = $region8
    $region5: #{tpu_custom_call.1} parent=1 // loop_body
      %s27 = ssub.s32 %s22, 1
      %s28 = ssub.s32 %s22, 2
      %s29 = sadd.s32 %s22, 1
      %s30 = ssub.s32 %s22, %s29
      %p31 = scmp.eq.s32.totalorder %s30, 0
      %s33 = sadd.s32 %s32, 1
      %s34 = scalar_select %p31, %s32, %s33
      %p37 = pneg %p31
      %p38 = scmp.eq.s32.totalorder %s22, 1
      %p39 = por %p37, %p38
      %p40 = scmp.ne.s32.totalorder %s32, %s35
      %p41 = scmp.eq.s32.totalorder %s22, 0
      %p42 = por %p40, %p41
      %p43 = scmp.ne.s32.totalorder %s32, %s35
      %p44 = scmp.eq.s32.totalorder %s27, 1
      %p45 = por %p43, %p44
      %p46 = scmp.ne.s32.totalorder %s35, %s36
      %p47 = scmp.eq.s32.totalorder %s27, 0
      %p48 = por %p46, %p47
      %p49 = scmp.ne.s32.totalorder %s35, %s36
      %p50 = scmp.eq.s32.totalorder %s28, 1
      %p51 = por %p49, %p50
      %p53 = scmp.ne.s32.totalorder %s36, %s52
      %p54 = scmp.eq.s32.totalorder %s28, 0
      %p55 = por %p53, %p54
      %s57 = sadd.s32 %s56, 1
      %p60 = scmp.eq.s32.totalorder %s22, 1
      %p61 = scmp.ne.s32.totalorder %s56, %s58
      %p62 = scmp.eq.s32.totalorder %s22, 0
      %p63 = por %p61, %p62
      %p64 = scmp.ne.s32.totalorder %s56, %s58
      %p65 = scmp.eq.s32.totalorder %s27, 1
      %p66 = por %p64, %p65
      %p67 = scmp.ne.s32.totalorder %s58, %s59
      %p68 = scmp.eq.s32.totalorder %s27, 0
      %p69 = por %p67, %p68
      %p70 = scmp.ne.s32.totalorder %s58, %s59
      %p71 = scmp.eq.s32.totalorder %s28, 1
      %p72 = por %p70, %p71
      %p74 = scmp.ne.s32.totalorder %s59, %s73
      %p75 = scmp.eq.s32.totalorder %s28, 0
      %p76 = por %p74, %p75
      %s78 = sadd.s32 %s77, 1
      %p81 = scmp.eq.s32.totalorder %s22, 1
      %p82 = scmp.ne.s32.totalorder %s77, %s79
      %p83 = scmp.eq.s32.totalorder %s22, 0
      %p84 = por %p82, %p83
      %p85 = scmp.ne.s32.totalorder %s77, %s79
      %p86 = scmp.eq.s32.totalorder %s27, 1
      %p87 = por %p85, %p86
      %p88 = scmp.ne.s32.totalorder %s79, %s80
      %p89 = scmp.eq.s32.totalorder %s27, 0
      %p90 = por %p88, %p89
      %p91 = scmp.ne.s32.totalorder %s79, %s80
      %p92 = scmp.eq.s32.totalorder %s28, 1
      %p93 = por %p91, %p92
      %p95 = scmp.ne.s32.totalorder %s80, %s94
      %p96 = scmp.eq.s32.totalorder %s28, 0
      %p97 = por %p95, %p96
      %s99 = sadd.s32 %s98, 1
      %p102 = scmp.eq.s32.totalorder %s22, 1
      %p103 = scmp.ne.s32.totalorder %s98, %s100
      %p104 = scmp.eq.s32.totalorder %s22, 0
      %p105 = por %p103, %p104
      %p106 = scmp.ne.s32.totalorder %s98, %s100
      %p107 = scmp.eq.s32.totalorder %s27, 1
      %p108 = por %p106, %p107
      %p109 = scmp.ne.s32.totalorder %s100, %s101
      %p110 = scmp.eq.s32.totalorder %s27, 0
      %p111 = por %p109, %p110
      %p112 = scmp.ne.s32.totalorder %s100, %s101
      %p113 = scmp.eq.s32.totalorder %s28, 1
      %p114 = por %p112, %p113
      %p116 = scmp.ne.s32.totalorder %s101, %s115
      %p117 = scmp.eq.s32.totalorder %s28, 0
      %p118 = por %p116, %p117
      %s120 = sadd.s32 %s119, 1
      %p123 = scmp.eq.s32.totalorder %s22, 1
      %p124 = scmp.ne.s32.totalorder %s119, %s121
      %p125 = scmp.eq.s32.totalorder %s22, 0
      %p126 = por %p124, %p125
      %p127 = scmp.ne.s32.totalorder %s119, %s121
      %p128 = scmp.eq.s32.totalorder %s27, 1
      %p129 = por %p127, %p128
      %p130 = scmp.ne.s32.totalorder %s121, %s122
      %p131 = scmp.eq.s32.totalorder %s27, 0
      %p132 = por %p130, %p131
      %p133 = scmp.ne.s32.totalorder %s121, %s122
      %p134 = scmp.eq.s32.totalorder %s28, 1
      %p135 = por %p133, %p134
      %p137 = scmp.ne.s32.totalorder %s122, %s136
      %p138 = scmp.eq.s32.totalorder %s28, 0
      %p139 = por %p137, %p138
      %s141 = sadd.s32 %s140, 1
      %p144 = scmp.eq.s32.totalorder %s22, 1
      %p145 = scmp.ne.s32.totalorder %s140, %s142
      %p146 = scmp.eq.s32.totalorder %s22, 0
      %p147 = por %p145, %p146
      %p148 = scmp.ne.s32.totalorder %s140, %s142
      %p149 = scmp.eq.s32.totalorder %s27, 1
      %p150 = por %p148, %p149
      %p151 = scmp.ne.s32.totalorder %s142, %s143
      %p152 = scmp.eq.s32.totalorder %s27, 0
      %p153 = por %p151, %p152
      %p154 = scmp.ne.s32.totalorder %s142, %s143
      %p155 = scmp.eq.s32.totalorder %s28, 1
      %p156 = por %p154, %p155
      %p158 = scmp.ne.s32.totalorder %s143, %s157
      %p159 = scmp.eq.s32.totalorder %s28, 0
      %p160 = por %p158, %p159
      %s162 = sadd.s32 %s161, 1
      %p165 = scmp.eq.s32.totalorder %s22, 1
      %p166 = scmp.ne.s32.totalorder %s161, %s163
      %p167 = scmp.eq.s32.totalorder %s22, 0
      %p168 = por %p166, %p167
      %p169 = scmp.ne.s32.totalorder %s161, %s163
      %p170 = scmp.eq.s32.totalorder %s27, 1
      %p171 = por %p169, %p170
      %p172 = scmp.ne.s32.totalorder %s163, %s164
      %p173 = scmp.eq.s32.totalorder %s27, 0
      %p174 = por %p172, %p173
      %p175 = scmp.ne.s32.totalorder %s163, %s164
      %p176 = scmp.eq.s32.totalorder %s28, 1
      %p177 = por %p175, %p176
      %p179 = scmp.ne.s32.totalorder %s164, %s178
      %p180 = scmp.eq.s32.totalorder %s28, 0
      %p181 = por %p179, %p180
      %s183 = sadd.s32 %s182, 1
      %p186 = scmp.eq.s32.totalorder %s22, 1
      %p187 = scmp.ne.s32.totalorder %s182, %s184
      %p188 = scmp.eq.s32.totalorder %s22, 0
      %p189 = por %p187, %p188
      %p190 = scmp.ne.s32.totalorder %s182, %s184
      %p191 = scmp.eq.s32.totalorder %s27, 1
      %p192 = por %p190, %p191
      %p193 = scmp.ne.s32.totalorder %s184, %s185
      %p194 = scmp.eq.s32.totalorder %s27, 0
      %p195 = por %p193, %p194
      %p196 = scmp.ne.s32.totalorder %s184, %s185
      %p197 = scmp.eq.s32.totalorder %s28, 1
      %p198 = por %p196, %p197
      %p200 = scmp.ne.s32.totalorder %s185, %s199
      %p201 = scmp.eq.s32.totalorder %s28, 0
      %p202 = por %p200, %p201
      %s204 = sadd.s32 %s203, 1
      %p207 = scmp.eq.s32.totalorder %s22, 1
      %p208 = scmp.ne.s32.totalorder %s203, %s205
      %p209 = scmp.eq.s32.totalorder %s22, 0
      %p210 = por %p208, %p209
      %p211 = scmp.ne.s32.totalorder %s203, %s205
      %p212 = scmp.eq.s32.totalorder %s27, 1
      %p213 = por %p211, %p212
      %p214 = scmp.ne.s32.totalorder %s205, %s206
      %p215 = scmp.eq.s32.totalorder %s27, 0
      %p216 = por %p214, %p215
      %p217 = scmp.ne.s32.totalorder %s205, %s206
      %p218 = scmp.eq.s32.totalorder %s28, 1
      %p219 = por %p217, %p218
      %p221 = scmp.ne.s32.totalorder %s206, %s220
      %p222 = scmp.eq.s32.totalorder %s28, 0
      %p223 = por %p221, %p222
      %s225 = sadd.s32 %s224, 1
      %p228 = scmp.eq.s32.totalorder %s22, 1
      %p229 = scmp.ne.s32.totalorder %s224, %s226
      %p230 = scmp.eq.s32.totalorder %s22, 0
      %p231 = por %p229, %p230
      %p232 = scmp.ne.s32.totalorder %s224, %s226
      %p233 = scmp.eq.s32.totalorder %s27, 1
      %p234 = por %p232, %p233
      %p235 = scmp.ne.s32.totalorder %s226, %s227
      %p236 = scmp.eq.s32.totalorder %s27, 0
      %p237 = por %p235, %p236
      %p238 = scmp.ne.s32.totalorder %s226, %s227
      %p239 = scmp.eq.s32.totalorder %s28, 1
      %p240 = por %p238, %p239
      %p242 = scmp.ne.s32.totalorder %s227, %s241
      %p243 = scmp.eq.s32.totalorder %s28, 0
      %p244 = por %p242, %p243
      %s246 = sadd.s32 %s245, 1
      %p249 = scmp.eq.s32.totalorder %s22, 1
      %p250 = scmp.ne.s32.totalorder %s245, %s247
      %p251 = scmp.eq.s32.totalorder %s22, 0
      %p252 = por %p250, %p251
      %p253 = scmp.ne.s32.totalorder %s245, %s247
      %p254 = scmp.eq.s32.totalorder %s27, 1
      %p255 = por %p253, %p254
      %p256 = scmp.ne.s32.totalorder %s247, %s248
      %p257 = scmp.eq.s32.totalorder %s27, 0
      %p258 = por %p256, %p257
      %p259 = scmp.ne.s32.totalorder %s247, %s248
      %p260 = scmp.eq.s32.totalorder %s28, 1
      %p261 = por %p259, %p260
      %p263 = scmp.ne.s32.totalorder %s248, %s262
      %p264 = scmp.eq.s32.totalorder %s28, 0
      %p265 = por %p263, %p264
      %s267 = sadd.s32 %s266, 1
      %p270 = scmp.eq.s32.totalorder %s22, 1
      %p271 = scmp.ne.s32.totalorder %s266, %s268
      %p272 = scmp.eq.s32.totalorder %s22, 0
      %p273 = por %p271, %p272
      %p274 = scmp.ne.s32.totalorder %s266, %s268
      %p275 = scmp.eq.s32.totalorder %s27, 1
      %p276 = por %p274, %p275
      %p277 = scmp.ne.s32.totalorder %s268, %s269
      %p278 = scmp.eq.s32.totalorder %s27, 0
      %p279 = por %p277, %p278
      %p280 = scmp.ne.s32.totalorder %s268, %s269
      %p281 = scmp.eq.s32.totalorder %s28, 1
      %p282 = por %p280, %p281
      %p284 = scmp.ne.s32.totalorder %s269, %s283
      %p285 = scmp.eq.s32.totalorder %s28, 0
      %p286 = por %p284, %p285
      %s288 = sadd.s32 %s287, 1
      %p291 = scmp.eq.s32.totalorder %s22, 1
      %p292 = scmp.ne.s32.totalorder %s287, %s289
      %p293 = scmp.eq.s32.totalorder %s22, 0
      %p294 = por %p292, %p293
      %p295 = scmp.ne.s32.totalorder %s287, %s289
      %p296 = scmp.eq.s32.totalorder %s27, 1
      %p297 = por %p295, %p296
      %p298 = scmp.ne.s32.totalorder %s289, %s290
      %p299 = scmp.eq.s32.totalorder %s27, 0
      %p300 = por %p298, %p299
      %p301 = scmp.ne.s32.totalorder %s289, %s290
      %p302 = scmp.eq.s32.totalorder %s28, 1
      %p303 = por %p301, %p302
      %p305 = scmp.ne.s32.totalorder %s290, %s304
      %p306 = scmp.eq.s32.totalorder %s28, 0
      %p307 = por %p305, %p306
      %s308 = ssub.s32 %s22, %s29
      %p309 = scmp.eq.s32.totalorder %s308, 0
      %s311 = sadd.s32 %s310, 1
      %s312 = scalar_select %p309, %s310, %s311
      %p315 = pneg %p309
      %p316 = scmp.eq.s32.totalorder %s22, 1
      %p317 = por %p315, %p316
      %p318 = scmp.ne.s32.totalorder %s310, %s313
      %p319 = scmp.eq.s32.totalorder %s22, 0
      %p320 = por %p318, %p319
      %p321 = scmp.ne.s32.totalorder %s310, %s313
      %p322 = scmp.eq.s32.totalorder %s27, 1
      %p323 = por %p321, %p322
      %p324 = scmp.ne.s32.totalorder %s313, %s314
      %p325 = scmp.eq.s32.totalorder %s27, 0
      %p326 = por %p324, %p325
      %p327 = scmp.ne.s32.totalorder %s313, %s314
      %p328 = scmp.eq.s32.totalorder %s28, 1
      %p329 = por %p327, %p328
      %p331 = scmp.ne.s32.totalorder %s314, %s330
      %p332 = scmp.eq.s32.totalorder %s28, 0
      %p333 = por %p331, %p332
      %p334 = scmp.le.s32.totalorder 1, %s22
      %p335 = scmp.lt.s32.totalorder %s22, 3
      %p336 = pnand %p334, %p335
      %p337 = pneg %p336
      // Predicated region
      $region9: #{tpu_custom_call.1} parent=5 // pred_check
        _
      $region10: #{tpu_custom_call.1} parent=5 // pred_check_branch
        %339 = sbr.rel (%p336) target = $region12
      $region11: #{tpu_custom_call.1} parent=5 // pred_region
        %s340 = ssub.s32 %s22, 1
        // Predicated region
        $region13: #{tpu_custom_call.1} parent=11 // pred_check
          %p341 = pneg %p69
        $region14: #{tpu_custom_call.1} parent=11 // pred_check_branch
          %343 = sbr.rel (%p341) target = $region16
        $region15: #{tpu_custom_call.1} parent=11 // pred_region
          _
        $region16: #{tpu_custom_call.1} parent=11 // pred_fallthru
          _
        // Predicated region
        $region17: #{tpu_custom_call.1} parent=11 // pred_check
          %p344 = pneg %p90
        $region18: #{tpu_custom_call.1} parent=11 // pred_check_branch
          %346 = sbr.rel (%p344) target = $region20
        $region19: #{tpu_custom_call.1} parent=11 // pred_region
          _
        $region20: #{tpu_custom_call.1} parent=11 // pred_fallthru
          _
        // Predicated region
        $region21: #{tpu_custom_call.1} parent=11 // pred_check
          %p347 = pneg %p111
        $region22: #{tpu_custom_call.1} parent=11 // pred_check_branch
          %349 = sbr.rel (%p347) target = $region24
        $region23: #{tpu_custom_call.1} parent=11 // pred_region
          _
        $region24: #{tpu_custom_call.1} parent=11 // pred_fallthru
          _
        // Predicated region
        $region25: #{tpu_custom_call.1} parent=11 // pred_check
          %p350 = pneg %p132
        $region26: #{tpu_custom_call.1} parent=11 // pred_check_branch
          %352 = sbr.rel (%p350) target = $region28
        $region27: #{tpu_custom_call.1} parent=11 // pred_region
          _
        $region28: #{tpu_custom_call.1} parent=11 // pred_fallthru
          _
        // Predicated region
        $region29: #{tpu_custom_call.1} parent=11 // pred_check
          %p353 = pneg %p153
        $region30: #{tpu_custom_call.1} parent=11 // pred_check_branch
          %355 = sbr.rel (%p353) target = $region32
        $region31: #{tpu_custom_call.1} parent=11 // pred_region
          _
        $region32: #{tpu_custom_call.1} parent=11 // pred_fallthru
          _
        // Predicated region
        $region33: #{tpu_custom_call.1} parent=11 // pred_check
          %p356 = pneg %p174
        $region34: #{tpu_custom_call.1} parent=11 // pred_check_branch
          %358 = sbr.rel (%p356) target = $region36
        $region35: #{tpu_custom_call.1} parent=11 // pred_region
          _
        $region36: #{tpu_custom_call.1} parent=11 // pred_fallthru
          _
        // Predicated region
        $region37: #{tpu_custom_call.1} parent=11 // pred_check
          %p359 = pneg %p195
        $region38: #{tpu_custom_call.1} parent=11 // pred_check_branch
          %361 = sbr.rel (%p359) target = $region40
        $region39: #{tpu_custom_call.1} parent=11 // pred_region
          _
        $region40: #{tpu_custom_call.1} parent=11 // pred_fallthru
          _
        // Predicated region
        $region41: #{tpu_custom_call.1} parent=11 // pred_check
          %p362 = pneg %p216
        $region42: #{tpu_custom_call.1} parent=11 // pred_check_branch
          %364 = sbr.rel (%p362) target = $region44
        $region43: #{tpu_custom_call.1} parent=11 // pred_region
          _
        $region44: #{tpu_custom_call.1} parent=11 // pred_fallthru
          _
        // Predicated region
        $region45: #{tpu_custom_call.1} parent=11 // pred_check
          %p365 = pneg %p237
        $region46: #{tpu_custom_call.1} parent=11 // pred_check_branch
          %367 = sbr.rel (%p365) target = $region48
        $region47: #{tpu_custom_call.1} parent=11 // pred_region
          _
        $region48: #{tpu_custom_call.1} parent=11 // pred_fallthru
          _
        // Predicated region
        $region49: #{tpu_custom_call.1} parent=11 // pred_check
          %p368 = pneg %p258
        $region50: #{tpu_custom_call.1} parent=11 // pred_check_branch
          %370 = sbr.rel (%p368) target = $region52
        $region51: #{tpu_custom_call.1} parent=11 // pred_region
          _
        $region52: #{tpu_custom_call.1} parent=11 // pred_fallthru
          _
        // Predicated region
        $region53: #{tpu_custom_call.1} parent=11 // pred_check
          %p371 = pneg %p279
        $region54: #{tpu_custom_call.1} parent=11 // pred_check_branch
          %373 = sbr.rel (%p371) target = $region56
        $region55: #{tpu_custom_call.1} parent=11 // pred_region
          _
        $region56: #{tpu_custom_call.1} parent=11 // pred_fallthru
          _
        // Predicated region
        $region57: #{tpu_custom_call.1} parent=11 // pred_check
          %p374 = pneg %p300
        $region58: #{tpu_custom_call.1} parent=11 // pred_check_branch
          %376 = sbr.rel (%p374) target = $region60
        $region59: #{tpu_custom_call.1} parent=11 // pred_region
          _
        $region60: #{tpu_custom_call.1} parent=11 // pred_fallthru
          _
      $region12: #{tpu_custom_call.1} parent=5 // pred_fallthru
        _
      %p377 = scmp.lt.s32.totalorder %s22, 2
      // Predicated region
      $region61: #{tpu_custom_call.1} parent=5 // pred_check
        %p378 = pneg %p377
      $region62: #{tpu_custom_call.1} parent=5 // pred_check_branch
        %380 = sbr.rel (%p378) target = $region64
      $region63: #{tpu_custom_call.1} parent=5 // pred_region
        // Predicated region
        $region65: #{tpu_custom_call.1} parent=63 // pred_check
          %p381 = pneg %p42
        $region66: #{tpu_custom_call.1} parent=63 // pred_check_branch
          %383 = sbr.rel (%p381) target = $region68
        $region67: #{tpu_custom_call.1} parent=63 // pred_region
          %p384 = scmp.lt.s32.totalorder %s22, 1
          %s385 = scalar_select %p384, %s22, 1
          %s386 = smul.addr %s385, 8
          %s387 = scalar_lea.vmem %s0, %s386
        $region68: #{tpu_custom_call.1} parent=63 // pred_fallthru
          _
      $region64: #{tpu_custom_call.1} parent=5 // pred_fallthru
        _
      %p388 = scmp.le.s32.totalorder 1, %s22
      %p389 = scmp.lt.s32.totalorder %s22, 3
      %p390 = pnand %p388, %p389
      %p391 = pneg %p390
      // Predicated region
      $region69: #{tpu_custom_call.1} parent=5 // pred_check
        _
      $region70: #{tpu_custom_call.1} parent=5 // pred_check_branch
        %393 = sbr.rel (%p390) target = $region72
      $region71: #{tpu_custom_call.1} parent=5 // pred_region
        %s394 = ssub.s32 %s22, 1
        %p395 = scmp.lt.s32.totalorder %s27, 1
        %s396 = scalar_select %p395, %s27, 1
        %s397 = smul.addr %s396, 8
        %s398 = scalar_lea.vmem %s0, %s397
        %p399 = pneg %p48
        %p400 = pneg %p45
        %p401 = pneg %p69
        %p402 = pneg %p66
        %p403 = pneg %p90
        %p404 = pneg %p87
        %p405 = pneg %p111
        %p406 = pneg %p108
        %p407 = pneg %p132
        %p408 = pneg %p129
        %p409 = pneg %p153
        %p410 = pneg %p150
        %p411 = pneg %p174
        %p412 = pneg %p171
        %p413 = pneg %p195
        %p414 = pneg %p192
        %p415 = pneg %p216
        %p416 = pneg %p213
        %p417 = pneg %p237
        %p418 = pneg %p234
        %p419 = pneg %p258
        %p420 = pneg %p255
        %p421 = pneg %p279
        %p422 = pneg %p276
        %p423 = pneg %p300
        %p424 = pneg %p297
        %p425 = pneg %p326
        %p426 = pneg %p323
        %s427 = sand.u32 %s313, 1
        %s428 = scalar_lea.sflag [#allocation3], %s427
        %s429 = sand.u32 %s313, 1
        %s430 = smul.addr %s429, 8
        %s431 = scalar_lea.vmem [#allocation2], %s430
        %p432 = scmp.lt.s32.totalorder %s27, 1
        %s433 = scalar_select %p432, %s27, 1
        %s434 = smul.addr %s433, 8
        %s435 = scalar_lea.vmem %s0, %s434
        %v437 = vld [vmem:[%s435] sm:$0xff]
        %v438 = vld [vmem:[%s1] sm:$0x1]
        %v439 = vld [vmem:[%s2] sm:$0x1]
        %vm440 = vcmask 523264
        %v441 = vsel %vm440, %v437, 0.0
        %442 = vadd.xlane.f32.xlu0 %v441
        %v443 = vpop.xlane.xlu0 %442
        %v444 = vrcp.pop 64.0
        %v445 = vmul.f32 %v443, %v444
        %v446 = vmul.f32 %v437, %v437
        %v447 = vsel %vm440, %v446, 0.0
        %448 = vadd.xlane.f32.xlu0 %v447
        %v449 = vpop.xlane.xlu0 %448
        %v450 = vmul.f32 %v449, %v444
        %v451 = vmul.f32 %v445, %v445
        %v452 = vsub.f32 %v450, %v451
        %v453 = vmax.f32 %v452, 0.0
        %v454 = vsub.f32 %v437, %v445
        %v455 = vadd.f32 %v453, 1e-05
        %v456 = vrsqrt.pop %v455
        %v457 = vmul.f32 %v454, %v456
        %v459 = vlaneseq
        %v460 = vshrl.u32 %v459, 7
        %v461 = vsub.s32 0, %v460
        %v462 = vrot.slane %v438, %v461
        %v464 = vmul.f32 %v457, %v462
        %v466 = vlaneseq
        %v467 = vshrl.u32 %v466, 7
        %v468 = vsub.s32 0, %v467
        %v469 = vrot.slane %v439, %v468
        %v471 = vadd.f32 %v464, %v469
        %v472 = vpack.c.bf16 %v471, %v471
        %v473 = vld [vmem:[%s3] sm:$0xff]
        %v474 = vld [vmem:[%s3 + $0x8] sm:$0xff]
        %v475 = vld [vmem:[%s3 + $0x10] sm:$0xff]
        %v476 = vld [vmem:[%s3 + $0x18] sm:$0xff]
        %v477 = vld [vmem:[%s3 + $0x20] sm:$0xff]
        %v478 = vld [vmem:[%s3 + $0x28] sm:$0xff]
        %v479 = vld [vmem:[%s3 + $0x30] sm:$0xff]
        %v480 = vld [vmem:[%s3 + $0x38] sm:$0xff]
        %v481 = vld [vmem:[%s4] sm:$0x3]
        %v483 = vlaneseq
        %v484 = vshrl.u32 %v483, 7
        %v485 = vsub.s32 0, %v484
        %v486 = vrot.slane %v481, %v485
        %v487 = vlaneseq
        %v488 = vshrl.u32 %v487, 7
        %v489 = vsub.s32 1, %v488
        %v490 = vrot.slane %v481, %v489
        %v501 = vunpack.c.l.b16 %v473
        %v502 = vunpack.c.h.b16 %v473
        %v503 = vunpack.c.l.b16 %v474
        %v504 = vunpack.c.h.b16 %v474
        %v505 = vunpack.c.l.b16 %v475
        %v506 = vunpack.c.h.b16 %v475
        %v507 = vunpack.c.l.b16 %v476
        %v508 = vunpack.c.h.b16 %v476
        %v509 = vunpack.c.l.b16 %v477
        %v510 = vunpack.c.h.b16 %v477
        %v511 = vunpack.c.l.b16 %v478
        %v512 = vunpack.c.h.b16 %v478
        %v513 = vunpack.c.l.b16 %v479
        %v514 = vunpack.c.h.b16 %v479
        %v515 = vunpack.c.l.b16 %v480
        %v516 = vunpack.c.h.b16 %v480
        %v517 = vpack.c.b16 %v503, %v501
        %v518 = vpack.c.b16 %v504, %v502
        %v519 = vpack.c.b16 %v507, %v505
        %v520 = vpack.c.b16 %v508, %v506
        %v521 = vpack.c.b16 %v511, %v509
        %v522 = vpack.c.b16 %v512, %v510
        %v523 = vpack.c.b16 %v515, %v513
        %v524 = vpack.c.b16 %v516, %v514
        %v534 = vsel %vm440, %v472, 0
        %536 = vmatprep.subr.bf16.mxu0 %v518
        %537 = vmatpush1.bf16.msra.mxu0 %v517
        %538 = vmatprep.subr.bf16.mxu0 %v520
        %539 = vmatpush1.bf16.msra.mxu0 %v519
        %540 = vmatprep.subr.bf16.mxu0 %v522
        %541 = vmatpush1.bf16.msra.mxu0 %v521
        %542 = vmatprep.subr.bf16.mxu0 %v524
        %543 = vmatpush1.bf16.msra.mxu0 %v523
        %544 = vmatprep.subr.bf16.mxu0 0
        %545 = vmatpush1.bf16.msra.mxu0 0
        %546 = vmatprep.subr.bf16.mxu0 0
        %547 = vmatpush1.bf16.msra.mxu0 0
        %548 = vmatprep.subr.bf16.mxu0 0
        %549 = vmatpush1.bf16.msra.mxu0 0
        %550 = vmatprep.subr.bf16.mxu0 0
        %551 = vmatpush1.bf16.msra.mxu0 0
        %552 = vmatprep.subr.bf16.mxu0 0
        %553 = vmatpush1.bf16.msra.mxu0 0
        %554 = vmatprep.subr.bf16.mxu0 0
        %555 = vmatpush1.bf16.msra.mxu0 0
        %556 = vmatprep.subr.bf16.mxu0 0
        %557 = vmatpush1.bf16.msra.mxu0 0
        %558 = vmatprep.subr.bf16.mxu0 0
        %559 = vmatpush1.bf16.msra.mxu0 0
        %560 = vmatprep.subr.bf16.mxu0 0
        %561 = vmatpush1.bf16.msra.mxu0 0
        %562 = vmatprep.subr.bf16.mxu0 0
        %563 = vmatpush1.bf16.msra.mxu0 0
        %564 = vmatprep.subr.bf16.mxu0 0
        %565 = vmatpush1.bf16.msra.mxu0 0
        %566 = vmatprep.subr.bf16.mxu0 0
        %567 = vmatpush1.bf16.msra.mxu0 0
        %568 = vmatprep.mubr.bf16.mxu0 0
        %569 = vmatmul.mubr.bf16.gmra.mrb[0].mxu0 %v534
        %v570 = vpop.f32.mrb[0].mxu0
        %v571 = vadd.f32 %v486, %v570
        %v572 = vpop.f32.mrb[0].mxu0
        %v573 = vadd.f32 %v490, %v572
        %v574 = vpop.f32.mrb[0].mxu0
        %v575 = vpop.f32.mrb[0].mxu0
        %576 = vdwg.mxu0
        %v577 = vpack.c.bf16 %v571, %v571
        %v578 = vpack.c.bf16 %v573, %v573
        %580 = vrot.lane.b32.xlu0 %v577, 64
        %v581 = vpop.permute.xlu0 %580
        %vm582 = vcmask 130048
        %v584 = vsel %vm582, %v577, 0
        %v587 = vsel %vm582, %v581, 0
        %589 = vmatprep.subr.bf16.mxu0 0
        %590 = vmatpush1.bf16.xpose.msra.mxu0 %v587
        %591 = vmatprep.subr.bf16.mxu0 0
        %592 = vmatpush1.bf16.xpose.msra.mxu0 0
        %593 = vmatprep.subr.bf16.mxu0 0
        %594 = vmatpush1.bf16.xpose.msra.mxu0 0
        %595 = vmatprep.subr.bf16.mxu0 0
        %596 = vmatpush1.bf16.xpose.msra.mxu0 0
        %597 = vmatprep.subr.bf16.mxu0 0
        %598 = vmatpush1.bf16.xpose.msra.mxu0 0
        %599 = vmatprep.subr.bf16.mxu0 0
        %600 = vmatpush1.bf16.xpose.msra.mxu0 0
        %601 = vmatprep.subr.bf16.mxu0 0
        %602 = vmatpush1.bf16.xpose.msra.mxu0 0
        %603 = vmatprep.subr.bf16.mxu0 0
        %604 = vmatpush1.bf16.xpose.msra.mxu0 0
        %605 = vmatprep.subr.bf16.mxu0 0
        %606 = vmatpush1.bf16.xpose.msra.mxu0 0
        %607 = vmatprep.subr.bf16.mxu0 0
        %608 = vmatpush1.bf16.xpose.msra.mxu0 0
        %609 = vmatprep.subr.bf16.mxu0 0
        %610 = vmatpush1.bf16.xpose.msra.mxu0 0
        %611 = vmatprep.subr.bf16.mxu0 0
        %612 = vmatpush1.bf16.xpose.msra.mxu0 0
        %613 = vmatprep.subr.bf16.mxu0 0
        %614 = vmatpush1.bf16.xpose.msra.mxu0 0
        %615 = vmatprep.subr.bf16.mxu0 0
        %616 = vmatpush1.bf16.xpose.msra.mxu0 0
        %617 = vmatprep.subr.bf16.mxu0 0
        %618 = vmatpush1.bf16.xpose.msra.mxu0 0
        %619 = vmatprep.subr.bf16.mxu0 0
        %620 = vmatpush1.bf16.xpose.msra.mxu0 0
        %621 = vmatprep.mubr.bf16.mxu0 0
        %622 = vmatmul.mubr.bf16.gmra.mrb[0].mxu0 %v584
        %v623 = vpop.f32.mrb[0].mxu0
        %v624 = vadd.f32 0.0, %v623
        %v625 = vpop.f32.mrb[0].mxu0
        %v626 = vpop.f32.mrb[0].mxu0
        %v627 = vpop.f32.mrb[0].mxu0
        %628 = vdwg.mxu0
        %vm629 = vcmask 64512
        %v630 = vsel %vm629, %v624, -inf
        %631 = vmax.xlane.f32.xlu0 %v630
        %v632 = vpop.xlane.xlu0 %631
        %v633 = vsub.f32 %v624, %v632
        %v634 = vmul.f32 %v633, 1.442695
        %v635 = vpow.pop %v634
        %v636 = vsel %vm629, %v635, 0.0
        %637 = vadd.xlane.f32.xlu0 %v636
        %v638 = vpop.xlane.xlu0 %637
        %v639 = vrcp.pop %v638
        %v640 = vmul.f32 %v635, %v639
        %v641 = vpack.c.bf16 %v640, %v640
        %v643 = vsel %vm629, %v641, 0
        %vm645 = vcmask 1043456
        %v647 = vsel %vm645, %v578, 0
        %649 = vmatprep.subr.bf16.mxu0 0
        %650 = vmatpush1.bf16.msra.mxu0 %v647
        %651 = vmatprep.subr.bf16.mxu0 0
        %652 = vmatpush1.bf16.msra.mxu0 0
        %653 = vmatprep.subr.bf16.mxu0 0
        %654 = vmatpush1.bf16.msra.mxu0 0
        %655 = vmatprep.subr.bf16.mxu0 0
        %656 = vmatpush1.bf16.msra.mxu0 0
        %657 = vmatprep.subr.bf16.mxu0 0
        %658 = vmatpush1.bf16.msra.mxu0 0
        %659 = vmatprep.subr.bf16.mxu0 0
        %660 = vmatpush1.bf16.msra.mxu0 0
        %661 = vmatprep.subr.bf16.mxu0 0
        %662 = vmatpush1.bf16.msra.mxu0 0
        %663 = vmatprep.subr.bf16.mxu0 0
        %664 = vmatpush1.bf16.msra.mxu0 0
        %665 = vmatprep.subr.bf16.mxu0 0
        %666 = vmatpush1.bf16.msra.mxu0 0
        %667 = vmatprep.subr.bf16.mxu0 0
        %668 = vmatpush1.bf16.msra.mxu0 0
        %669 = vmatprep.subr.bf16.mxu0 0
        %670 = vmatpush1.bf16.msra.mxu0 0
        %671 = vmatprep.subr.bf16.mxu0 0
        %672 = vmatpush1.bf16.msra.mxu0 0
        %673 = vmatprep.subr.bf16.mxu0 0
        %674 = vmatpush1.bf16.msra.mxu0 0
        %675 = vmatprep.subr.bf16.mxu0 0
        %676 = vmatpush1.bf16.msra.mxu0 0
        %677 = vmatprep.subr.bf16.mxu0 0
        %678 = vmatpush1.bf16.msra.mxu0 0
        %679 = vmatprep.subr.bf16.mxu0 0
        %680 = vmatpush1.bf16.msra.mxu0 0
        %681 = vmatprep.mubr.bf16.mxu0 0
        %682 = vmatmul.mubr.bf16.gmra.mrb[0].mxu0 %v643
        %v683 = vpop.f32.mrb[0].mxu0
        %v684 = vadd.f32 0.0, %v683
        %v685 = vpop.f32.mrb[0].mxu0
        %v686 = vpop.f32.mrb[0].mxu0
        %v687 = vpop.f32.mrb[0].mxu0
        %688 = vdwg.mxu0
        %689 = vrot.lane.b32.xlu0 %v577, 112
        %v690 = vpop.permute.xlu0 %689
        %691 = vrot.lane.b32.xlu0 %v577, 48
        %v692 = vpop.permute.xlu0 %691
        %v694 = vsel %vm582, %v690, 0
        %v697 = vsel %vm582, %v692, 0
        %699 = vmatprep.subr.bf16.mxu0 0
        %700 = vmatpush1.bf16.xpose.msra.mxu0 %v697
        %701 = vmatprep.subr.bf16.mxu0 0
        %702 = vmatpush1.bf16.xpose.msra.mxu0 0
        %703 = vmatprep.subr.bf16.mxu0 0
        %704 = vmatpush1.bf16.xpose.msra.mxu0 0
        %705 = vmatprep.subr.bf16.mxu0 0
        %706 = vmatpush1.bf16.xpose.msra.mxu0 0
        %707 = vmatprep.subr.bf16.mxu0 0
        %708 = vmatpush1.bf16.xpose.msra.mxu0 0
        %709 = vmatprep.subr.bf16.mxu0 0
        %710 = vmatpush1.bf16.xpose.msra.mxu0 0
        %711 = vmatprep.subr.bf16.mxu0 0
        %712 = vmatpush1.bf16.xpose.msra.mxu0 0
        %713 = vmatprep.subr.bf16.mxu0 0
        %714 = vmatpush1.bf16.xpose.msra.mxu0 0
        %715 = vmatprep.subr.bf16.mxu0 0
        %716 = vmatpush1.bf16.xpose.msra.mxu0 0
        %717 = vmatprep.subr.bf16.mxu0 0
        %718 = vmatpush1.bf16.xpose.msra.mxu0 0
        %719 = vmatprep.subr.bf16.mxu0 0
        %720 = vmatpush1.bf16.xpose.msra.mxu0 0
        %721 = vmatprep.subr.bf16.mxu0 0
        %722 = vmatpush1.bf16.xpose.msra.mxu0 0
        %723 = vmatprep.subr.bf16.mxu0 0
        %724 = vmatpush1.bf16.xpose.msra.mxu0 0
        %725 = vmatprep.subr.bf16.mxu0 0
        %726 = vmatpush1.bf16.xpose.msra.mxu0 0
        %727 = vmatprep.subr.bf16.mxu0 0
        %728 = vmatpush1.bf16.xpose.msra.mxu0 0
        %729 = vmatprep.subr.bf16.mxu0 0
        %730 = vmatpush1.bf16.xpose.msra.mxu0 0
        %731 = vmatprep.mubr.bf16.mxu0 0
        %732 = vmatmul.mubr.bf16.gmra.mrb[0].mxu0 %v694
        %v733 = vpop.f32.mrb[0].mxu0
        %v734 = vadd.f32 0.0, %v733
        %v735 = vpop.f32.mrb[0].mxu0
        %v736 = vpop.f32.mrb[0].mxu0
        %v737 = vpop.f32.mrb[0].mxu0
        %738 = vdwg.mxu0
        %v739 = vsel %vm629, %v734, -inf
        %740 = vmax.xlane.f32.xlu0 %v739
        %v741 = vpop.xlane.xlu0 %740
        %v742 = vsub.f32 %v734, %v741
        %v743 = vmul.f32 %v742, 1.442695
        %v744 = vpow.pop %v743
        %v745 = vsel %vm629, %v744, 0.0
        %746 = vadd.xlane.f32.xlu0 %v745
        %v747 = vpop.xlane.xlu0 %746
        %v748 = vrcp.pop %v747
        %v749 = vmul.f32 %v744, %v748
        %v750 = vpack.c.bf16 %v749, %v749
        %752 = vrot.lane.b32.xlu0 %v578, 112
        %v753 = vpop.permute.xlu0 %752
        %v755 = vsel %vm629, %v750, 0
        %v758 = vsel %vm645, %v753, 0
        %760 = vmatprep.subr.bf16.mxu0 0
        %761 = vmatpush1.bf16.msra.mxu0 %v758
        %762 = vmatprep.subr.bf16.mxu0 0
        %763 = vmatpush1.bf16.msra.mxu0 0
        %764 = vmatprep.subr.bf16.mxu0 0
        %765 = vmatpush1.bf16.msra.mxu0 0
        %766 = vmatprep.subr.bf16.mxu0 0
        %767 = vmatpush1.bf16.msra.mxu0 0
        %768 = vmatprep.subr.bf16.mxu0 0
        %769 = vmatpush1.bf16.msra.mxu0 0
        %770 = vmatprep.subr.bf16.mxu0 0
        %771 = vmatpush1.bf16.msra.mxu0 0
        %772 = vmatprep.subr.bf16.mxu0 0
        %773 = vmatpush1.bf16.msra.mxu0 0
        %774 = vmatprep.subr.bf16.mxu0 0
        %775 = vmatpush1.bf16.msra.mxu0 0
        %776 = vmatprep.subr.bf16.mxu0 0
        %777 = vmatpush1.bf16.msra.mxu0 0
        %778 = vmatprep.subr.bf16.mxu0 0
        %779 = vmatpush1.bf16.msra.mxu0 0
        %780 = vmatprep.subr.bf16.mxu0 0
        %781 = vmatpush1.bf16.msra.mxu0 0
        %782 = vmatprep.subr.bf16.mxu0 0
        %783 = vmatpush1.bf16.msra.mxu0 0
        %784 = vmatprep.subr.bf16.mxu0 0
        %785 = vmatpush1.bf16.msra.mxu0 0
        %786 = vmatprep.subr.bf16.mxu0 0
        %787 = vmatpush1.bf16.msra.mxu0 0
        %788 = vmatprep.subr.bf16.mxu0 0
        %789 = vmatpush1.bf16.msra.mxu0 0
        %790 = vmatprep.subr.bf16.mxu0 0
        %791 = vmatpush1.bf16.msra.mxu0 0
        %792 = vmatprep.mubr.bf16.mxu0 0
        %793 = vmatmul.mubr.bf16.gmra.mrb[0].mxu0 %v755
        %v794 = vpop.f32.mrb[0].mxu0
        %v795 = vadd.f32 0.0, %v794
        %v796 = vpop.f32.mrb[0].mxu0
        %v797 = vpop.f32.mrb[0].mxu0
        %v798 = vpop.f32.mrb[0].mxu0
        %799 = vdwg.mxu0
        %800 = vrot.lane.b32.xlu0 %v577, 96
        %v801 = vpop.permute.xlu0 %800
        %802 = vrot.lane.b32.xlu0 %v577, 32
        %v803 = vpop.permute.xlu0 %802
        %v805 = vsel %vm582, %v801, 0
        %v808 = vsel %vm582, %v803, 0
        %810 = vmatprep.subr.bf16.mxu0 0
        %811 = vmatpush1.bf16.xpose.msra.mxu0 %v808
        %812 = vmatprep.subr.bf16.mxu0 0
        %813 = vmatpush1.bf16.xpose.msra.mxu0 0
        %814 = vmatprep.subr.bf16.mxu0 0
        %815 = vmatpush1.bf16.xpose.msra.mxu0 0
        %816 = vmatprep.subr.bf16.mxu0 0
        %817 = vmatpush1.bf16.xpose.msra.mxu0 0
        %818 = vmatprep.subr.bf16.mxu0 0
        %819 = vmatpush1.bf16.xpose.msra.mxu0 0
        %820 = vmatprep.subr.bf16.mxu0 0
        %821 = vmatpush1.bf16.xpose.msra.mxu0 0
        %822 = vmatprep.subr.bf16.mxu0 0
        %823 = vmatpush1.bf16.xpose.msra.mxu0 0
        %824 = vmatprep.subr.bf16.mxu0 0
        %825 = vmatpush1.bf16.xpose.msra.mxu0 0
        %826 = vmatprep.subr.bf16.mxu0 0
        %827 = vmatpush1.bf16.xpose.msra.mxu0 0
        %828 = vmatprep.subr.bf16.mxu0 0
        %829 = vmatpush1.bf16.xpose.msra.mxu0 0
        %830 = vmatprep.subr.bf16.mxu0 0
        %831 = vmatpush1.bf16.xpose.msra.mxu0 0
        %832 = vmatprep.subr.bf16.mxu0 0
        %833 = vmatpush1.bf16.xpose.msra.mxu0 0
        %834 = vmatprep.subr.bf16.mxu0 0
        %835 = vmatpush1.bf16.xpose.msra.mxu0 0
        %836 = vmatprep.subr.bf16.mxu0 0
        %837 = vmatpush1.bf16.xpose.msra.mxu0 0
        %838 = vmatprep.subr.bf16.mxu0 0
        %839 = vmatpush1.bf16.xpose.msra.mxu0 0
        %840 = vmatprep.subr.bf16.mxu0 0
        %841 = vmatpush1.bf16.xpose.msra.mxu0 0
        %842 = vmatprep.mubr.bf16.mxu0 0
        %843 = vmatmul.mubr.bf16.gmra.mrb[0].mxu0 %v805
        %v844 = vpop.f32.mrb[0].mxu0
        %v845 = vadd.f32 0.0, %v844
        %v846 = vpop.f32.mrb[0].mxu0
        %v847 = vpop.f32.mrb[0].mxu0
        %v848 = vpop.f32.mrb[0].mxu0
        %849 = vdwg.mxu0
        %v850 = vsel %vm629, %v845, -inf
        %851 = vmax.xlane.f32.xlu0 %v850
        %v852 = vpop.xlane.xlu0 %851
        %v853 = vsub.f32 %v845, %v852
        %v854 = vmul.f32 %v853, 1.442695
        %v855 = vpow.pop %v854
        %v856 = vsel %vm629, %v855, 0.0
        %857 = vadd.xlane.f32.xlu0 %v856
        %v858 = vpop.xlane.xlu0 %857
        %v859 = vrcp.pop %v858
        %v860 = vmul.f32 %v855, %v859
        %v861 = vpack.c.bf16 %v860, %v860
        %862 = vrot.lane.b32.xlu0 %v578, 96
        %v863 = vpop.permute.xlu0 %862
        %v865 = vsel %vm629, %v861, 0
        %v868 = vsel %vm645, %v863, 0
        %870 = vmatprep.subr.bf16.mxu0 0
        %871 = vmatpush1.bf16.msra.mxu0 %v868
        %872 = vmatprep.subr.bf16.mxu0 0
        %873 = vmatpush1.bf16.msra.mxu0 0
        %874 = vmatprep.subr.bf16.mxu0 0
        %875 = vmatpush1.bf16.msra.mxu0 0
        %876 = vmatprep.subr.bf16.mxu0 0
        %877 = vmatpush1.bf16.msra.mxu0 0
        %878 = vmatprep.subr.bf16.mxu0 0
        %879 = vmatpush1.bf16.msra.mxu0 0
        %880 = vmatprep.subr.bf16.mxu0 0
        %881 = vmatpush1.bf16.msra.mxu0 0
        %882 = vmatprep.subr.bf16.mxu0 0
        %883 = vmatpush1.bf16.msra.mxu0 0
        %884 = vmatprep.subr.bf16.mxu0 0
        %885 = vmatpush1.bf16.msra.mxu0 0
        %886 = vmatprep.subr.bf16.mxu0 0
        %887 = vmatpush1.bf16.msra.mxu0 0
        %888 = vmatprep.subr.bf16.mxu0 0
        %889 = vmatpush1.bf16.msra.mxu0 0
        %890 = vmatprep.subr.bf16.mxu0 0
        %891 = vmatpush1.bf16.msra.mxu0 0
        %892 = vmatprep.subr.bf16.mxu0 0
        %893 = vmatpush1.bf16.msra.mxu0 0
        %894 = vmatprep.subr.bf16.mxu0 0
        %895 = vmatpush1.bf16.msra.mxu0 0
        %896 = vmatprep.subr.bf16.mxu0 0
        %897 = vmatpush1.bf16.msra.mxu0 0
        %898 = vmatprep.subr.bf16.mxu0 0
        %899 = vmatpush1.bf16.msra.mxu0 0
        %900 = vmatprep.subr.bf16.mxu0 0
        %901 = vmatpush1.bf16.msra.mxu0 0
        %902 = vmatprep.mubr.bf16.mxu0 0
        %903 = vmatmul.mubr.bf16.gmra.mrb[0].mxu0 %v865
        %v904 = vpop.f32.mrb[0].mxu0
        %v905 = vadd.f32 0.0, %v904
        %v906 = vpop.f32.mrb[0].mxu0
        %v907 = vpop.f32.mrb[0].mxu0
        %v908 = vpop.f32.mrb[0].mxu0
        %909 = vdwg.mxu0
        %910 = vrot.lane.b32.xlu0 %v577, 80
        %v911 = vpop.permute.xlu0 %910
        %912 = vrot.lane.b32.xlu0 %v577, 16
        %v913 = vpop.permute.xlu0 %912
        %v915 = vsel %vm582, %v911, 0
        %v918 = vsel %vm582, %v913, 0
        %920 = vmatprep.subr.bf16.mxu0 0
        %921 = vmatpush1.bf16.xpose.msra.mxu0 %v918
        %922 = vmatprep.subr.bf16.mxu0 0
        %923 = vmatpush1.bf16.xpose.msra.mxu0 0
        %924 = vmatprep.subr.bf16.mxu0 0
        %925 = vmatpush1.bf16.xpose.msra.mxu0 0
        %926 = vmatprep.subr.bf16.mxu0 0
        %927 = vmatpush1.bf16.xpose.msra.mxu0 0
        %928 = vmatprep.subr.bf16.mxu0 0
        %929 = vmatpush1.bf16.xpose.msra.mxu0 0
        %930 = vmatprep.subr.bf16.mxu0 0
        %931 = vmatpush1.bf16.xpose.msra.mxu0 0
        %932 = vmatprep.subr.bf16.mxu0 0
        %933 = vmatpush1.bf16.xpose.msra.mxu0 0
        %934 = vmatprep.subr.bf16.mxu0 0
        %935 = vmatpush1.bf16.xpose.msra.mxu0 0
        %936 = vmatprep.subr.bf16.mxu0 0
        %937 = vmatpush1.bf16.xpose.msra.mxu0 0
        %938 = vmatprep.subr.bf16.mxu0 0
        %939 = vmatpush1.bf16.xpose.msra.mxu0 0
        %940 = vmatprep.subr.bf16.mxu0 0
        %941 = vmatpush1.bf16.xpose.msra.mxu0 0
        %942 = vmatprep.subr.bf16.mxu0 0
        %943 = vmatpush1.bf16.xpose.msra.mxu0 0
        %944 = vmatprep.subr.bf16.mxu0 0
        %945 = vmatpush1.bf16.xpose.msra.mxu0 0
        %946 = vmatprep.subr.bf16.mxu0 0
        %947 = vmatpush1.bf16.xpose.msra.mxu0 0
        %948 = vmatprep.subr.bf16.mxu0 0
        %949 = vmatpush1.bf16.xpose.msra.mxu0 0
        %950 = vmatprep.subr.bf16.mxu0 0
        %951 = vmatpush1.bf16.xpose.msra.mxu0 0
        %952 = vmatprep.mubr.bf16.mxu0 0
        %953 = vmatmul.mubr.bf16.gmra.mrb[0].mxu0 %v915
        %v954 = vpop.f32.mrb[0].mxu0
        %v955 = vadd.f32 0.0, %v954
        %v956 = vpop.f32.mrb[0].mxu0
        %v957 = vpop.f32.mrb[0].mxu0
        %v958 = vpop.f32.mrb[0].mxu0
        %959 = vdwg.mxu0
        %v960 = vsel %vm629, %v955, -inf
        %961 = vmax.xlane.f32.xlu0 %v960
        %v962 = vpop.xlane.xlu0 %961
        %v963 = vsub.f32 %v955, %v962
        %v964 = vmul.f32 %v963, 1.442695
        %v965 = vpow.pop %v964
        %v966 = vsel %vm629, %v965, 0.0
        %967 = vadd.xlane.f32.xlu0 %v966
        %v968 = vpop.xlane.xlu0 %967
        %v969 = vrcp.pop %v968
        %v970 = vmul.f32 %v965, %v969
        %v971 = vpack.c.bf16 %v970, %v970
        %972 = vrot.lane.b32.xlu0 %v578, 80
        %v973 = vpop.permute.xlu0 %972
        %v975 = vsel %vm629, %v971, 0
        %v978 = vsel %vm645, %v973, 0
        %980 = vmatprep.subr.bf16.mxu0 0
        %981 = vmatpush1.bf16.msra.mxu0 %v978
        %982 = vmatprep.subr.bf16.mxu0 0
        %983 = vmatpush1.bf16.msra.mxu0 0
        %984 = vmatprep.subr.bf16.mxu0 0
        %985 = vmatpush1.bf16.msra.mxu0 0
        %986 = vmatprep.subr.bf16.mxu0 0
        %987 = vmatpush1.bf16.msra.mxu0 0
        %988 = vmatprep.subr.bf16.mxu0 0
        %989 = vmatpush1.bf16.msra.mxu0 0
        %990 = vmatprep.subr.bf16.mxu0 0
        %991 = vmatpush1.bf16.msra.mxu0 0
        %992 = vmatprep.subr.bf16.mxu0 0
        %993 = vmatpush1.bf16.msra.mxu0 0
        %994 = vmatprep.subr.bf16.mxu0 0
        %995 = vmatpush1.bf16.msra.mxu0 0
        %996 = vmatprep.subr.bf16.mxu0 0
        %997 = vmatpush1.bf16.msra.mxu0 0
        %998 = vmatprep.subr.bf16.mxu0 0
        %999 = vmatpush1.bf16.msra.mxu0 0
        %1000 = vmatprep.subr.bf16.mxu0 0
        %1001 = vmatpush1.bf16.msra.mxu0 0
        %1002 = vmatprep.subr.bf16.mxu0 0
        %1003 = vmatpush1.bf16.msra.mxu0 0
        %1004 = vmatprep.subr.bf16.mxu0 0
        %1005 = vmatpush1.bf16.msra.mxu0 0
        %1006 = vmatprep.subr.bf16.mxu0 0
        %1007 = vmatpush1.bf16.msra.mxu0 0
        %1008 = vmatprep.subr.bf16.mxu0 0
        %1009 = vmatpush1.bf16.msra.mxu0 0
        %1010 = vmatprep.subr.bf16.mxu0 0
        %1011 = vmatpush1.bf16.msra.mxu0 0
        %1012 = vmatprep.mubr.bf16.mxu0 0
        %1013 = vmatmul.mubr.bf16.gmra.mrb[0].mxu0 %v975
        %v1014 = vpop.f32.mrb[0].mxu0
        %v1015 = vadd.f32 0.0, %v1014
        %v1016 = vpop.f32.mrb[0].mxu0
        %v1017 = vpop.f32.mrb[0].mxu0
        %v1018 = vpop.f32.mrb[0].mxu0
        %1019 = vdwg.mxu0
        %1021 = vrot.lane.b32.xlu0 %v795, 16
        %v1022 = vpop.permute.xlu0 %1021
        %1025 = vrot.lane.b32.xlu0 %v905, 32
        %v1026 = vpop.permute.xlu0 %1025
        %1029 = vrot.lane.b32.xlu0 %v1015, 48
        %v1030 = vpop.permute.xlu0 %1029
        %v1032 = vsel %vm582, %v684, %v1022
        %vm1033 = vcmask 261120
        %v1034 = vsel %vm1033, %v1032, %v1026
        %vm1035 = vcmask 392192
        %v1036 = vsel %vm1035, %v1034, %v1030
        %v1037 = vpack.c.bf16 %v1036, %v1036
        %v1038 = vld [vmem:[%s5] sm:$0xf]
        %v1039 = vld [vmem:[%s5 + $0x4] sm:$0xf]
        %v1040 = vld [vmem:[%s5 + $0x8] sm:$0xf]
        %v1041 = vld [vmem:[%s5 + $0xc] sm:$0xf]
        %v1042 = vld [vmem:[%s5 + $0x10] sm:$0xf]
        %v1043 = vld [vmem:[%s5 + $0x14] sm:$0xf]
        %v1044 = vld [vmem:[%s5 + $0x18] sm:$0xf]
        %v1045 = vld [vmem:[%s5 + $0x1c] sm:$0xf]
        %v1046 = vld [vmem:[%s6] sm:$0x1]
        %v1048 = vlaneseq
        %v1049 = vshrl.u32 %v1048, 7
        %v1050 = vsub.s32 0, %v1049
        %v1051 = vrot.slane %v1046, %v1050
        %v1061 = vunpack.c.l.b16 %v1038
        %v1062 = vunpack.c.l.b16 %v1039
        %v1063 = vunpack.c.l.b16 %v1040
        %v1064 = vunpack.c.l.b16 %v1041
        %v1065 = vunpack.c.l.b16 %v1042
        %v1066 = vunpack.c.l.b16 %v1043
        %v1067 = vunpack.c.l.b16 %v1044
        %v1068 = vunpack.c.l.b16 %v1045
        %v1069 = vpack.c.b16 %v1062, %v1061
        %v1070 = vpack.c.b16 %v1064, %v1063
        %v1071 = vpack.c.b16 %v1066, %v1065
        %v1072 = vpack.c.b16 %v1068, %v1067
        %v1078 = vsel %vm440, %v1037, 0
        %1080 = vmatprep.subr.bf16.mxu0 0
        %1081 = vmatpush1.bf16.msra.mxu0 %v1069
        %1082 = vmatprep.subr.bf16.mxu0 0
        %1083 = vmatpush1.bf16.msra.mxu0 %v1070
        %1084 = vmatprep.subr.bf16.mxu0 0
        %1085 = vmatpush1.bf16.msra.mxu0 %v1071
        %1086 = vmatprep.subr.bf16.mxu0 0
        %1087 = vmatpush1.bf16.msra.mxu0 %v1072
        %1088 = vmatprep.subr.bf16.mxu0 0
        %1089 = vmatpush1.bf16.msra.mxu0 0
        %1090 = vmatprep.subr.bf16.mxu0 0
        %1091 = vmatpush1.bf16.msra.mxu0 0
        %1092 = vmatprep.subr.bf16.mxu0 0
        %1093 = vmatpush1.bf16.msra.mxu0 0
        %1094 = vmatprep.subr.bf16.mxu0 0
        %1095 = vmatpush1.bf16.msra.mxu0 0
        %1096 = vmatprep.subr.bf16.mxu0 0
        %1097 = vmatpush1.bf16.msra.mxu0 0
        %1098 = vmatprep.subr.bf16.mxu0 0
        %1099 = vmatpush1.bf16.msra.mxu0 0
        %1100 = vmatprep.subr.bf16.mxu0 0
        %1101 = vmatpush1.bf16.msra.mxu0 0
        %1102 = vmatprep.subr.bf16.mxu0 0
        %1103 = vmatpush1.bf16.msra.mxu0 0
        %1104 = vmatprep.subr.bf16.mxu0 0
        %1105 = vmatpush1.bf16.msra.mxu0 0
        %1106 = vmatprep.subr.bf16.mxu0 0
        %1107 = vmatpush1.bf16.msra.mxu0 0
        %1108 = vmatprep.subr.bf16.mxu0 0
        %1109 = vmatpush1.bf16.msra.mxu0 0
        %1110 = vmatprep.subr.bf16.mxu0 0
        %1111 = vmatpush1.bf16.msra.mxu0 0
        %1112 = vmatprep.mubr.bf16.mxu0 0
        %1113 = vmatmul.mubr.bf16.gmra.mrb[0].mxu0 %v1078
        %v1114 = vpop.f32.mrb[0].mxu0
        %v1115 = vadd.f32 %v1051, %v1114
        %v1116 = vpop.f32.mrb[0].mxu0
        %v1117 = vpop.f32.mrb[0].mxu0
        %v1118 = vpop.f32.mrb[0].mxu0
        %1119 = vdwg.mxu0
        %v1120 = vadd.f32 %v437, %v1115
        %v1121 = vld [vmem:[%s7] sm:$0x1]
        %v1122 = vld [vmem:[%s8] sm:$0x1]
        %v1123 = vsel %vm440, %v1120, 0.0
        %1124 = vadd.xlane.f32.xlu0 %v1123
        %v1125 = vpop.xlane.xlu0 %1124
        %v1126 = vmul.f32 %v1125, %v444
        %v1127 = vmul.f32 %v1120, %v1120
        %v1128 = vsel %vm440, %v1127, 0.0
        %1129 = vadd.xlane.f32.xlu0 %v1128
        %v1130 = vpop.xlane.xlu0 %1129
        %v1131 = vmul.f32 %v1130, %v444
        %v1132 = vmul.f32 %v1126, %v1126
        %v1133 = vsub.f32 %v1131, %v1132
        %v1134 = vmax.f32 %v1133, 0.0
        %v1135 = vsub.f32 %v1120, %v1126
        %v1136 = vadd.f32 %v1134, 1e-05
        %v1137 = vrsqrt.pop %v1136
        %v1138 = vmul.f32 %v1135, %v1137
        %v1140 = vlaneseq
        %v1141 = vshrl.u32 %v1140, 7
        %v1142 = vsub.s32 0, %v1141
        %v1143 = vrot.slane %v1121, %v1142
        %v1145 = vmul.f32 %v1138, %v1143
        %v1147 = vlaneseq
        %v1148 = vshrl.u32 %v1147, 7
        %v1149 = vsub.s32 0, %v1148
        %v1150 = vrot.slane %v1122, %v1149
        %v1152 = vadd.f32 %v1145, %v1150
        %v1153 = vpack.c.bf16 %v1152, %v1152
        %v1154 = vld [vmem:[%s9] sm:$0xff]
        %v1155 = vld [vmem:[%s9 + $0x8] sm:$0xff]
        %v1156 = vld [vmem:[%s9 + $0x10] sm:$0xff]
        %v1157 = vld [vmem:[%s9 + $0x18] sm:$0xff]
        %v1158 = vld [vmem:[%s9 + $0x20] sm:$0xff]
        %v1159 = vld [vmem:[%s9 + $0x28] sm:$0xff]
        %v1160 = vld [vmem:[%s9 + $0x30] sm:$0xff]
        %v1161 = vld [vmem:[%s9 + $0x38] sm:$0xff]
        %v1162 = vld [vmem:[%s10] sm:$0x3]
        %v1164 = vlaneseq
        %v1165 = vshrl.u32 %v1164, 7
        %v1166 = vsub.s32 0, %v1165
        %v1167 = vrot.slane %v1162, %v1166
        %v1168 = vlaneseq
        %v1169 = vshrl.u32 %v1168, 7
        %v1170 = vsub.s32 1, %v1169
        %v1171 = vrot.slane %v1162, %v1170
        %v1182 = vunpack.c.l.b16 %v1154
        %v1183 = vunpack.c.h.b16 %v1154
        %v1184 = vunpack.c.l.b16 %v1155
        %v1185 = vunpack.c.h.b16 %v1155
        %v1186 = vunpack.c.l.b16 %v1156
        %v1187 = vunpack.c.h.b16 %v1156
        %v1188 = vunpack.c.l.b16 %v1157
        %v1189 = vunpack.c.h.b16 %v1157
        %v1190 = vunpack.c.l.b16 %v1158
        %v1191 = vunpack.c.h.b16 %v1158
        %v1192 = vunpack.c.l.b16 %v1159
        %v1193 = vunpack.c.h.b16 %v1159
        %v1194 = vunpack.c.l.b16 %v1160
        %v1195 = vunpack.c.h.b16 %v1160
        %v1196 = vunpack.c.l.b16 %v1161
        %v1197 = vunpack.c.h.b16 %v1161
        %v1198 = vpack.c.b16 %v1184, %v1182
        %v1199 = vpack.c.b16 %v1185, %v1183
        %v1200 = vpack.c.b16 %v1188, %v1186
        %v1201 = vpack.c.b16 %v1189, %v1187
        %v1202 = vpack.c.b16 %v1192, %v1190
        %v1203 = vpack.c.b16 %v1193, %v1191
        %v1204 = vpack.c.b16 %v1196, %v1194
        %v1205 = vpack.c.b16 %v1197, %v1195
        %v1215 = vsel %vm440, %v1153, 0
        %1217 = vmatprep.subr.bf16.mxu0 %v1199
        %1218 = vmatpush1.bf16.msra.mxu0 %v1198
        %1219 = vmatprep.subr.bf16.mxu0 %v1201
        %1220 = vmatpush1.bf16.msra.mxu0 %v1200
        %1221 = vmatprep.subr.bf16.mxu0 %v1203
        %1222 = vmatpush1.bf16.msra.mxu0 %v1202
        %1223 = vmatprep.subr.bf16.mxu0 %v1205
        %1224 = vmatpush1.bf16.msra.mxu0 %v1204
        %1225 = vmatprep.subr.bf16.mxu0 0
        %1226 = vmatpush1.bf16.msra.mxu0 0
        %1227 = vmatprep.subr.bf16.mxu0 0
        %1228 = vmatpush1.bf16.msra.mxu0 0
        %1229 = vmatprep.subr.bf16.mxu0 0
        %1230 = vmatpush1.bf16.msra.mxu0 0
        %1231 = vmatprep.subr.bf16.mxu0 0
        %1232 = vmatpush1.bf16.msra.mxu0 0
        %1233 = vmatprep.subr.bf16.mxu0 0
        %1234 = vmatpush1.bf16.msra.mxu0 0
        %1235 = vmatprep.subr.bf16.mxu0 0
        %1236 = vmatpush1.bf16.msra.mxu0 0
        %1237 = vmatprep.subr.bf16.mxu0 0
        %1238 = vmatpush1.bf16.msra.mxu0 0
        %1239 = vmatprep.subr.bf16.mxu0 0
        %1240 = vmatpush1.bf16.msra.mxu0 0
        %1241 = vmatprep.subr.bf16.mxu0 0
        %1242 = vmatpush1.bf16.msra.mxu0 0
        %1243 = vmatprep.subr.bf16.mxu0 0
        %1244 = vmatpush1.bf16.msra.mxu0 0
        %1245 = vmatprep.subr.bf16.mxu0 0
        %1246 = vmatpush1.bf16.msra.mxu0 0
        %1247 = vmatprep.subr.bf16.mxu0 0
        %1248 = vmatpush1.bf16.msra.mxu0 0
        %1249 = vmatprep.mubr.bf16.mxu0 0
        %1250 = vmatmul.mubr.bf16.gmra.mrb[0].mxu0 %v1215
        %v1251 = vpop.f32.mrb[0].mxu0
        %v1252 = vadd.f32 %v1167, %v1251
        %v1253 = vpop.f32.mrb[0].mxu0
        %v1254 = vadd.f32 %v1171, %v1253
        %v1255 = vpop.f32.mrb[0].mxu0
        %v1256 = vpop.f32.mrb[0].mxu0
        %1257 = vdwg.mxu0
        %v1258 = vmul.f32 %v1252, 1.702
        %v1259 = vmul.f32 %v1254, 1.702
        %v1260 = vxor.u32 %v1258, 2147483648
        %v1261 = vxor.u32 %v1259, 2147483648
        %v1262 = vmul.f32 %v1260, 1.442695
        %v1263 = vpow.pop %v1262
        %v1264 = vmul.f32 %v1261, 1.442695
        %v1265 = vpow.pop %v1264
        %v1266 = vadd.f32 %v1263, 1.0
        %v1267 = vadd.f32 %v1265, 1.0
        %v1268 = vrcp.pop %v1266
        %v1269 = vmul.f32 1.0, %v1268
        %v1270 = vrcp.pop %v1267
        %v1271 = vmul.f32 1.0, %v1270
        %v1272 = vmul.f32 %v1252, %v1269
        %v1273 = vmul.f32 %v1254, %v1271
        %v1274 = vpack.c.bf16 %v1272, %v1272
        %v1275 = vpack.c.bf16 %v1273, %v1273
        %v1276 = vld [vmem:[%s11] sm:$0xf]
        %v1277 = vld [vmem:[%s11 + $0x4] sm:$0xf]
        %v1278 = vld [vmem:[%s11 + $0x8] sm:$0xf]
        %v1279 = vld [vmem:[%s11 + $0xc] sm:$0xf]
        %v1280 = vld [vmem:[%s11 + $0x10] sm:$0xf]
        %v1281 = vld [vmem:[%s11 + $0x14] sm:$0xf]
        %v1282 = vld [vmem:[%s11 + $0x18] sm:$0xf]
        %v1283 = vld [vmem:[%s11 + $0x1c] sm:$0xf]
        %v1284 = vld [vmem:[%s11 + $0x20] sm:$0xf]
        %v1285 = vld [vmem:[%s11 + $0x24] sm:$0xf]
        %v1286 = vld [vmem:[%s11 + $0x28] sm:$0xf]
        %v1287 = vld [vmem:[%s11 + $0x2c] sm:$0xf]
        %v1288 = vld [vmem:[%s11 + $0x30] sm:$0xf]
        %v1289 = vld [vmem:[%s11 + $0x34] sm:$0xf]
        %v1290 = vld [vmem:[%s11 + $0x38] sm:$0xf]
        %v1291 = vld [vmem:[%s11 + $0x3c] sm:$0xf]
        %v1292 = vld [vmem:[%s11 + $0x40] sm:$0xf]
        %v1293 = vld [vmem:[%s11 + $0x44] sm:$0xf]
        %v1294 = vld [vmem:[%s11 + $0x48] sm:$0xf]
        %v1295 = vld [vmem:[%s11 + $0x4c] sm:$0xf]
        %v1296 = vld [vmem:[%s11 + $0x50] sm:$0xf]
        %v1297 = vld [vmem:[%s11 + $0x54] sm:$0xf]
        %v1298 = vld [vmem:[%s11 + $0x58] sm:$0xf]
        %v1299 = vld [vmem:[%s11 + $0x5c] sm:$0xf]
        %v1300 = vld [vmem:[%s11 + $0x60] sm:$0xf]
        %v1301 = vld [vmem:[%s11 + $0x64] sm:$0xf]
        %v1302 = vld [vmem:[%s11 + $0x68] sm:$0xf]
        %v1303 = vld [vmem:[%s11 + $0x6c] sm:$0xf]
        %v1304 = vld [vmem:[%s11 + $0x70] sm:$0xf]
        %v1305 = vld [vmem:[%s11 + $0x74] sm:$0xf]
        %v1306 = vld [vmem:[%s11 + $0x78] sm:$0xf]
        %v1307 = vld [vmem:[%s11 + $0x7c] sm:$0xf]
        %v1308 = vld [vmem:[%s12] sm:$0x1]
        %v1310 = vlaneseq
        %v1311 = vshrl.u32 %v1310, 7
        %v1312 = vsub.s32 0, %v1311
        %v1313 = vrot.slane %v1308, %v1312
        %v1347 = vunpack.c.l.b16 %v1276
        %v1348 = vunpack.c.l.b16 %v1277
        %v1349 = vunpack.c.l.b16 %v1278
        %v1350 = vunpack.c.l.b16 %v1279
        %v1351 = vunpack.c.l.b16 %v1280
        %v1352 = vunpack.c.l.b16 %v1281
        %v1353 = vunpack.c.l.b16 %v1282
        %v1354 = vunpack.c.l.b16 %v1283
        %v1355 = vunpack.c.l.b16 %v1284
        %v1356 = vunpack.c.l.b16 %v1285
        %v1357 = vunpack.c.l.b16 %v1286
        %v1358 = vunpack.c.l.b16 %v1287
        %v1359 = vunpack.c.l.b16 %v1288
        %v1360 = vunpack.c.l.b16 %v1289
        %v1361 = vunpack.c.l.b16 %v1290
        %v1362 = vunpack.c.l.b16 %v1291
        %v1363 = vunpack.c.l.b16 %v1292
        %v1364 = vunpack.c.l.b16 %v1293
        %v1365 = vunpack.c.l.b16 %v1294
        %v1366 = vunpack.c.l.b16 %v1295
        %v1367 = vunpack.c.l.b16 %v1296
        %v1368 = vunpack.c.l.b16 %v1297
        %v1369 = vunpack.c.l.b16 %v1298
        %v1370 = vunpack.c.l.b16 %v1299
        %v1371 = vunpack.c.l.b16 %v1300
        %v1372 = vunpack.c.l.b16 %v1301
        %v1373 = vunpack.c.l.b16 %v1302
        %v1374 = vunpack.c.l.b16 %v1303
        %v1375 = vunpack.c.l.b16 %v1304
        %v1376 = vunpack.c.l.b16 %v1305
        %v1377 = vunpack.c.l.b16 %v1306
        %v1378 = vunpack.c.l.b16 %v1307
        %v1379 = vpack.c.b16 %v1348, %v1347
        %v1380 = vpack.c.b16 %v1350, %v1349
        %v1381 = vpack.c.b16 %v1352, %v1351
        %v1382 = vpack.c.b16 %v1354, %v1353
        %v1383 = vpack.c.b16 %v1356, %v1355
        %v1384 = vpack.c.b16 %v1358, %v1357
        %v1385 = vpack.c.b16 %v1360, %v1359
        %v1386 = vpack.c.b16 %v1362, %v1361
        %v1387 = vpack.c.b16 %v1364, %v1363
        %v1388 = vpack.c.b16 %v1366, %v1365
        %v1389 = vpack.c.b16 %v1368, %v1367
        %v1390 = vpack.c.b16 %v1370, %v1369
        %v1391 = vpack.c.b16 %v1372, %v1371
        %v1392 = vpack.c.b16 %v1374, %v1373
        %v1393 = vpack.c.b16 %v1376, %v1375
        %v1394 = vpack.c.b16 %v1378, %v1377
        %1411 = vmatprep.subr.bf16.mxu0 0
        %1412 = vmatpush1.bf16.msra.mxu0 %v1379
        %1413 = vmatprep.subr.bf16.mxu0 0
        %1414 = vmatpush1.bf16.msra.mxu0 %v1380
        %1415 = vmatprep.subr.bf16.mxu0 0
        %1416 = vmatpush1.bf16.msra.mxu0 %v1381
        %1417 = vmatprep.subr.bf16.mxu0 0
        %1418 = vmatpush1.bf16.msra.mxu0 %v1382
        %1419 = vmatprep.subr.bf16.mxu0 0
        %1420 = vmatpush1.bf16.msra.mxu0 %v1383
        %1421 = vmatprep.subr.bf16.mxu0 0
        %1422 = vmatpush1.bf16.msra.mxu0 %v1384
        %1423 = vmatprep.subr.bf16.mxu0 0
        %1424 = vmatpush1.bf16.msra.mxu0 %v1385
        %1425 = vmatprep.subr.bf16.mxu0 0
        %1426 = vmatpush1.bf16.msra.mxu0 %v1386
        %1427 = vmatprep.subr.bf16.mxu0 0
        %1428 = vmatpush1.bf16.msra.mxu0 %v1387
        %1429 = vmatprep.subr.bf16.mxu0 0
        %1430 = vmatpush1.bf16.msra.mxu0 %v1388
        %1431 = vmatprep.subr.bf16.mxu0 0
        %1432 = vmatpush1.bf16.msra.mxu0 %v1389
        %1433 = vmatprep.subr.bf16.mxu0 0
        %1434 = vmatpush1.bf16.msra.mxu0 %v1390
        %1435 = vmatprep.subr.bf16.mxu0 0
        %1436 = vmatpush1.bf16.msra.mxu0 %v1391
        %1437 = vmatprep.subr.bf16.mxu0 0
        %1438 = vmatpush1.bf16.msra.mxu0 %v1392
        %1439 = vmatprep.subr.bf16.mxu0 0
        %1440 = vmatpush1.bf16.msra.mxu0 %v1393
        %1441 = vmatprep.subr.bf16.mxu0 0
        %1442 = vmatpush1.bf16.msra.mxu0 %v1394
        %1443 = vmatprep.mubr.bf16.mxu0 %v1275
        %1444 = vmatmul.mubr.bf16.gmra.mrb[0].mxu0 %v1274
        %v1445 = vpop.f32.mrb[0].mxu0
        %v1446 = vadd.f32 %v1313, %v1445
        %v1447 = vpop.f32.mrb[0].mxu0
        %v1448 = vpop.f32.mrb[0].mxu0
        %v1449 = vpop.f32.mrb[0].mxu0
        %1450 = vdwg.mxu0
        %v1451 = vadd.f32 %v1120, %v1446
        %1452 = vst.msk [vmem:[%s431] sm:$0xff] %vm440, %v1451
        %s1453 = sand.u32 %s313, 1
        %s1454 = scalar_lea.sflag [#allocation3], %s1453
        %s1455 = sand.u32 %s313, 1
        %s1456 = smul.addr %s1455, 8
        %s1457 = scalar_lea.vmem [#allocation2], %s1456
        // Predicated region
        $region73: #{tpu_custom_call.1} parent=71 // pred_check
          %p1458 = pneg %p323
        $region74: #{tpu_custom_call.1} parent=71 // pred_check_branch
          %1460 = sbr.rel (%p1458) target = $region76
        $region75: #{tpu_custom_call.1} parent=71 // pred_region
          %s1462 = ssub.s32 128, 128
          %1463 = vsyncadd %s1454, %s1462
          %s1464 = smul.addr %s27, 128
          %s1465 = scalar_lea.hbm %s13, %s1464
          %s1467 = sshll.u32 %s1457, 4
          %s1468 = int_to_ptr.vmem [resolvable:$true] %s1467
          %1470 = dma.vmem_to_hbm [thread:$0]  %s1468, 128, %s1465, %s1454
        $region76: #{tpu_custom_call.1} parent=71 // pred_fallthru
          _
      $region72: #{tpu_custom_call.1} parent=5 // pred_fallthru
        _
      %p1471 = scmp.le.s32.totalorder 2, %s22
      // Predicated region
      $region77: #{tpu_custom_call.1} parent=5 // pred_check
        %p1472 = pneg %p1471
      $region78: #{tpu_custom_call.1} parent=5 // pred_check_branch
        %1474 = sbr.rel (%p1472) target = $region80
      $region79: #{tpu_custom_call.1} parent=5 // pred_region
        %s1475 = ssub.s32 %s22, 2
        // Predicated region
        $region81: #{tpu_custom_call.1} parent=79 // pred_check
          %p1476 = pneg %p329
        $region82: #{tpu_custom_call.1} parent=79 // pred_check_branch
          %1478 = sbr.rel (%p1476) target = $region84
        $region83: #{tpu_custom_call.1} parent=79 // pred_region
          %s1479 = sand.u32 %s314, 1
          %s1480 = scalar_lea.sflag [#allocation3], %s1479
          %s1481 = sand.u32 %s314, 1
          %s1482 = smul.addr %s1481, 8
          %s1483 = scalar_lea.vmem [#allocation2], %s1482
          %1484 = dma.done %s1480, 128
        $region84: #{tpu_custom_call.1} parent=79 // pred_fallthru
          _
      $region80: #{tpu_custom_call.1} parent=5 // pred_fallthru
        _
    $region6: #{tpu_custom_call.1} parent=1 // loop_footer
      %s26 = sadd.s32 1, %s22
    $region7: #{tpu_custom_call.1} parent=1 // loop_footer_branch
      %21 = sbr.rel target = $region3
    $region8: #{tpu_custom_call.1} parent=1 // loop_exit
      _
    %1485 = vsyncpa [#allocation3], 1
    %s1486 = scalar_lea.sflag [#allocation3], 1
    %1487 = vsyncpa %s1486, 1

</llo_original>
